<compile_context>
chip_gen: v6e
topology: v6e:2x2x1
jax: 0.10.0
libtpu: 0.0.40
codegen_flags: <defaults>
</compile_context>

<pallas_src>
import jax
import jax.numpy as jnp
from jax.experimental import pallas as pl
from jax.experimental.pallas import tpu as pltpu


# --------------------------------------------------------------------------
# Fused Pallas kernel (whole residual block in one call, VMEM-resident)
# --------------------------------------------------------------------------
def _make_resblock_kernel(img_w, l_total, cin, cout, has_skip):
    """Fused conv3x3 -> LReLU -> conv3x3 -> LReLU -> (+skip) kernel body."""
    taps = [(dh, dw) for dh in (-1, 0, 1) for dw in (-1, 0, 1)]

    def conv3x3(x_f32, c, mask_ref, stk_ref, w_ref, b_ref):
        # Stack the 9 shifted & masked taps into a (9*c, L) bf16 VMEM operand
        # (mask applied in f32, downcast fused into the scratch store), then
        # run ONE MXU matmul against the (cout, 9*c) bf16 weight slab.
        for t, (dh, dw) in enumerate(taps):
            off = dh * img_w + dw
            if off == 0:
                tap = x_f32                              # center tap: mask == 1
            else:
                tap = pltpu.roll(x_f32, shift=(-off) % l_total, axis=1) * mask_ref[t]
            stk_ref[t * c:(t + 1) * c, :] = tap.astype(jnp.bfloat16)
        acc = jnp.dot(w_ref[...], stk_ref[0:9 * c, :],
                      preferred_element_type=jnp.float32)
        return acc + b_ref[...]                          # f32 bias / accumulate

    def leaky(v):                                        # LeakyReLU(0.01), f32
        return jnp.maximum(v, 0.01 * v)

    if has_skip:
        def kernel(x_ref, mask_ref, w1_ref, b1_ref, w2_ref, b2_ref,
                   ws_ref, bs_ref, o_ref, stk_ref):
            x = x_ref[...]                                           # (cin, L)
            h = leaky(conv3x3(x, cin, mask_ref, stk_ref, w1_ref, b1_ref))
            h = leaky(conv3x3(h, cout, mask_ref, stk_ref, w2_ref, b2_ref))
            ident = jnp.dot(ws_ref[...], x.astype(jnp.bfloat16),
                            preferred_element_type=jnp.float32) + bs_ref[...]
            o_ref[...] = h + ident
    else:
        def kernel(x_ref, mask_ref, w1_ref, b1_ref, w2_ref, b2_ref,
                   o_ref, stk_ref):
            x = x_ref[...]
            h = leaky(conv3x3(x, cin, mask_ref, stk_ref, w1_ref, b1_ref))
            h = leaky(conv3x3(h, cout, mask_ref, stk_ref, w2_ref, b2_ref))
            o_ref[...] = h + x

    return kernel


def _build_tap_masks(h, w):
    """(9, 1, H*W) f32 masks implementing zero padding=1 for the 9 taps."""
    hw = h * w
    p = jnp.arange(hw)
    hi = p // w
    wi = p % w
    masks = []
    for dh in (-1, 0, 1):
        for dw in (-1, 0, 1):
            valid = ((hi + dh >= 0) & (hi + dh < h) &
                     (wi + dw >= 0) & (wi + dw < w))
            masks.append(valid)
    return jnp.stack(masks).astype(jnp.float32).reshape(9, 1, hw)


def _default_grid_splits(n):
    """One grid step on single-TensorCore chips (v5e/v6e); 2-way batch split
    on v7x so both TensorCores get work."""
    try:
        kind = jax.devices()[0].device_kind.lower()
    except Exception:
        return 1
    if n % 2 == 0 and ("v7" in kind or "7x" in kind):
        return 2
    return 1


def residual_block_slim_forward(x_nchw, kp, grid_splits=None):
    """x: (N, Cin, H, W) NCHW  ->  (N, Cout, H, W)."""
    n, cin, h, w = x_nchw.shape
    cout = kp["cout"]
    assert cin == kp["cin"]
    hw = h * w
    assert hw % 128 == 0  # lane-dense spatial axis
    # TODO(synk): if H*W is not a multiple of 128, pad the lane axis and make
    #             the masks also zero the padded lanes / pad-region roll wrap.

    if grid_splits is None:
        grid_splits = _default_grid_splits(n)
    if n % grid_splits != 0:
        grid_splits = 1
    nb = n // grid_splits            # images processed per grid step
    l_blk = nb * hw                  # lane extent per grid step

    # Fold the batch onto the lane axis: (N, C, H, W) -> (C, N*H*W).
    x = jnp.transpose(x_nchw.reshape(n, cin, hw).astype(jnp.float32), (1, 0, 2))
    x = x.reshape(cin, n * hw)

    # Per-position zero-padding masks, tiled once per image within a block so
    # rolls that wrap across an image boundary are zeroed.
    masks = jnp.tile(_build_tap_masks(h, w), (1, 1, nb))        # (9, 1, l_blk)

    has_skip = kp["ws"] is not None
    kernel = _make_resblock_kernel(w, l_blk, cin, cout, has_skip)

    args = [x, masks, kp["w1"], kp["b1"], kp["w2"], kp["b2"]]
    # Weights / biases / masks are grid-invariant; with the collapsed grid
    # (1-2 steps) their default double-buffering is negligible here.
    # TODO(synk): at production channel counts give the invariant operands
    #             pipeline_mode=pl.Buffered(1) (or stage once into scratch)
    #             and row-tile H with a +/-1 halo so the fully-resident design
    #             fits v7x's 64 MiB VMEM.
    in_specs = [
        pl.BlockSpec((cin, l_blk), lambda i: (0, i)),            # activations
        pl.BlockSpec((9, 1, l_blk), lambda i: (0, 0, 0)),        # tap masks
        pl.BlockSpec((cout, 9 * cin), lambda i: (0, 0)),         # conv1 W (bf16)
        pl.BlockSpec((cout, 1), lambda i: (0, 0)),               # conv1 b (f32)
        pl.BlockSpec((cout, 9 * cout), lambda i: (0, 0)),        # conv2 W (bf16)
        pl.BlockSpec((cout, 1), lambda i: (0, 0)),               # conv2 b (f32)
    ]
    if has_skip:
        args += [kp["ws"], kp["bs"]]
        in_specs += [
            pl.BlockSpec((cout, cin), lambda i: (0, 0)),         # skip 1x1 W
            pl.BlockSpec((cout, 1), lambda i: (0, 0)),           # skip b
        ]

    out = pl.pallas_call(
        kernel,
        out_shape=jax.ShapeDtypeStruct((cout, n * hw), jnp.float32),
        grid=(grid_splits,),
        in_specs=in_specs,
        out_specs=pl.BlockSpec((cout, l_blk), lambda i: (0, i)),
        scratch_shapes=[pltpu.VMEM((9 * max(cin, cout), l_blk), jnp.bfloat16)],
        compiler_params=pltpu.CompilerParams(
            # TODO(synk): on v7x verify both TensorCores are busy in the
            #             profile; if one idles, switch this axis to
            #             pltpu.CORE_PARALLEL (or use pl.core_map).
            dimension_semantics=("parallel",),
            vmem_limit_bytes=32 * 1024 * 1024,
        ),
    )(*args)

    # (Cout, N*H*W) -> (N, Cout, H, W)
    return jnp.transpose(out.reshape(cout, n, hw), (1, 0, 2)).reshape(n, cout, h, w)


# --------------------------------------------------------------------------
# Parameters: max-sized (conv_slim) storage + one-time hoisted kernel layout
# --------------------------------------------------------------------------
def make_params(key, in_list, out_list):
    in_max, out_max = max(in_list), max(out_list)
    keys = jax.random.split(key, 3)

    def conv(k, co, ci, ks):
        k1, k2 = jax.random.split(k)
        wgt = jax.random.normal(k1, (co, ci, ks, ks), jnp.float32) * 0.2
        bias = jax.random.normal(k2, (co,), jnp.float32) * 0.1
        return {"w": wgt, "b": bias}

    params = {
        "conv1": conv(keys[0], out_max, in_max, 3),
        "conv2": conv(keys[1], out_max, out_max, 3),
    }
    if in_list != out_list:
        params["skip"] = conv(keys[2], out_max, in_max, 1)
    return params


def prepare_kernel_params(params, in_list, out_list, index_channel=0):
    """conv_slim channel slicing + (cout, 9*cin) bf16 weight re-layout,
    hoisted out of the forward pass."""
    cin = in_list[index_channel]
    cout = out_list[index_channel]

    def prep3x3(w_full, b_full, ci, co):
        wgt = w_full[:co, :ci]                                   # (co, ci, 3, 3)
        # K ordered (tap, cin): column t*ci + c matches the kernel's stacked
        # scratch row t*ci + c (tap t = 3*kh + kw).
        wk = jnp.transpose(wgt, (0, 2, 3, 1)).reshape(co, 9 * ci)
        return (wk.astype(jnp.bfloat16),
                b_full[:co].reshape(co, 1).astype(jnp.float32))

    w1, b1 = prep3x3(params["conv1"]["w"], params["conv1"]["b"], cin, cout)
    w2, b2 = prep3x3(params["conv2"]["w"], params["conv2"]["b"], cout, cout)
    kp = {"cin": cin, "cout": cout, "w1": w1, "b1": b1, "w2": w2, "b2": b2,
          "ws": None, "bs": None}
    if "skip" in params:
        kp["ws"] = params["skip"]["w"][:cout, :cin, 0, 0].astype(jnp.bfloat16)
        kp["bs"] = params["skip"]["b"][:cout].reshape(cout, 1).astype(jnp.float32)
    return kp


# --------------------------------------------------------------------------
# Pure-JAX reference (lax.conv, f32) used only to validate the Pallas result
# --------------------------------------------------------------------------
def ref_forward(x, params, in_list, out_list, index_channel=0):
    cin, cout = in_list[index_channel], out_list[index_channel]

    def conv(inp, p, ci, co, pad):
        y = jax.lax.conv_general_dilated(
            inp, p["w"][:co, :ci], (1, 1), [(pad, pad), (pad, pad)],
            dimension_numbers=("NCHW", "OIHW", "NCHW"))
        return y + p["b"][:co].reshape(1, co, 1, 1)

    out = conv(x, params["conv1"], cin, cout, 1)
    out = jnp.where(out >= 0, out, 0.01 * out)
    out = conv(out, params["conv2"], cout, cout, 1)
    out = jnp.where(out >= 0, out, 0.01 * out)
    identity = conv(x, params["skip"], cin, cout, 0) if "skip" in params else x
    return out + identity


# --------------------------------------------------------------------------
if __name__ == "__main__":
    # conv_slim "slimmable" channel lists; index_channel=0 -> small config.
    IN_LIST = [4, 8]
    OUT_LIST = [6, 12]   # in != out -> the 1x1 skip conv path is exercised
    INDEX = 0

    key = jax.random.PRNGKey(0)
    kx, kparam = jax.random.split(key)

    N, C, H, W = 2, IN_LIST[INDEX], 16, 16
    x = jax.random.normal(kx, (N, C, H, W), jnp.float32)

    params = make_params(kparam, IN_LIST, OUT_LIST)
    kp = prepare_kernel_params(params, IN_LIST, OUT_LIST, INDEX)

    fwd = jax.jit(lambda xx: residual_block_slim_forward(xx, kp))
    out = jax.block_until_ready(fwd(x))

    ref = jax.block_until_ready(ref_forward(x, params, IN_LIST, OUT_LIST, INDEX))
    assert out.shape == (N, OUT_LIST[INDEX], H, W)
    max_err = float(jnp.max(jnp.abs(out - ref)))
    # bf16 MXU operands with f32 accumulation vs. an all-f32 reference:
    # expect ~1e-2-level differences at these magnitudes.
    assert jnp.allclose(out, ref, atol=8e-2, rtol=8e-2), max_err

    print("KERNEL_OK")
</pallas_src>

<mosaic_0001>
module attributes {stable_mosaic.version = 11 : i64} {
  func.func @kernel(%arg0: i32, %arg1: memref<4x512xf32, #tpu.memory_space<vmem>>, %arg2: memref<9x1x512xf32, #tpu.memory_space<vmem>>, %arg3: memref<6x36xbf16, #tpu.memory_space<vmem>>, %arg4: memref<6x1xf32, #tpu.memory_space<vmem>>, %arg5: memref<6x54xbf16, #tpu.memory_space<vmem>>, %arg6: memref<6x1xf32, #tpu.memory_space<vmem>>, %arg7: memref<6x4xbf16, #tpu.memory_space<vmem>>, %arg8: memref<6x1xf32, #tpu.memory_space<vmem>>, %arg9: memref<6x512xf32, #tpu.memory_space<vmem>>, %arg10: memref<54x512xbf16, #tpu.memory_space<vmem>>) attributes {dimension_semantics = [#tpu.dimension_semantics<parallel>], iteration_bounds = array<i64: 1>, scalar_prefetch = 0 : i64, scratch_operands = 1 : i64, tpu.core_type = #tpu.core_type<tc>, window_params = [{transform_indices = @transform_0, window_bounds = array<i64: 4, 512>}, {pipeline_mode = #tpu.pipeline_mode<synchronous>, transform_indices = @transform_1, window_bounds = array<i64: 9, 1, 512>}, {pipeline_mode = #tpu.pipeline_mode<synchronous>, transform_indices = @transform_2, window_bounds = array<i64: 6, 36>}, {pipeline_mode = #tpu.pipeline_mode<synchronous>, transform_indices = @transform_3, window_bounds = array<i64: 6, 1>}, {pipeline_mode = #tpu.pipeline_mode<synchronous>, transform_indices = @transform_4, window_bounds = array<i64: 6, 54>}, {pipeline_mode = #tpu.pipeline_mode<synchronous>, transform_indices = @transform_5, window_bounds = array<i64: 6, 1>}, {pipeline_mode = #tpu.pipeline_mode<synchronous>, transform_indices = @transform_6, window_bounds = array<i64: 6, 4>}, {pipeline_mode = #tpu.pipeline_mode<synchronous>, transform_indices = @transform_7, window_bounds = array<i64: 6, 1>}, {transform_indices = @transform_8, window_bounds = array<i64: 6, 512>}]} {
    %c0 = arith.constant 0 : index
    %c0_0 = arith.constant 0 : index
    %0 = vector.load %arg1[%c0, %c0_0] : memref<4x512xf32, #tpu.memory_space<vmem>>, vector<4x512xf32>
    %c17_i32 = arith.constant 17 : i32
    %1 = tpu.dynamic_rotate %0 by %c17_i32 dim 1 : vector<4x512xf32>, i32 -> vector<4x512xf32>
    %c0_1 = arith.constant 0 : index
    %c0_2 = arith.constant 0 : index
    %c0_3 = arith.constant 0 : index
    %2 = vector.load %arg2[%c0_1, %c0_2, %c0_3] : memref<9x1x512xf32, #tpu.memory_space<vmem>>, vector<1x1x512xf32>
    %3 = vector.shape_cast %2 : vector<1x1x512xf32> to vector<1x512xf32>
    %4 = vector.broadcast %3 : vector<1x512xf32> to vector<4x512xf32>
    %5 = arith.mulf %1, %4 : vector<4x512xf32>
    %6 = arith.truncf %5 : vector<4x512xf32> to vector<4x512xbf16>
    %c0_4 = arith.constant 0 : index
    %c0_5 = arith.constant 0 : index
    %7 = vector.load %arg10[%c0_4, %c0_5] : memref<54x512xbf16, #tpu.memory_space<vmem>>, vector<4x512xbf16>
    tpu.vector_store %arg10[%c0_4, %c0_5], %6 {strides = array<i32>} : memref<54x512xbf16, #tpu.memory_space<vmem>>, vector<4x512xbf16>,
    %c16_i32 = arith.constant 16 : i32
    %8 = tpu.dynamic_rotate %0 by %c16_i32 dim 1 : vector<4x512xf32>, i32 -> vector<4x512xf32>
    %c1 = arith.constant 1 : index
    %c0_6 = arith.constant 0 : index
    %c0_7 = arith.constant 0 : index
    %9 = vector.load %arg2[%c1, %c0_6, %c0_7] : memref<9x1x512xf32, #tpu.memory_space<vmem>>, vector<1x1x512xf32>
    %10 = vector.shape_cast %9 : vector<1x1x512xf32> to vector<1x512xf32>
    %11 = vector.broadcast %10 : vector<1x512xf32> to vector<4x512xf32>
    %12 = arith.mulf %8, %11 : vector<4x512xf32>
    %13 = arith.truncf %12 : vector<4x512xf32> to vector<4x512xbf16>
    %c4 = arith.constant 4 : index
    %c0_8 = arith.constant 0 : index
    %14 = vector.load %arg10[%c4, %c0_8] : memref<54x512xbf16, #tpu.memory_space<vmem>>, vector<4x512xbf16>
    tpu.vector_store %arg10[%c4, %c0_8], %13 {strides = array<i32>} : memref<54x512xbf16, #tpu.memory_space<vmem>>, vector<4x512xbf16>,
    %c15_i32 = arith.constant 15 : i32
    %15 = tpu.dynamic_rotate %0 by %c15_i32 dim 1 : vector<4x512xf32>, i32 -> vector<4x512xf32>
    %c2 = arith.constant 2 : index
    %c0_9 = arith.constant 0 : index
    %c0_10 = arith.constant 0 : index
    %16 = vector.load %arg2[%c2, %c0_9, %c0_10] : memref<9x1x512xf32, #tpu.memory_space<vmem>>, vector<1x1x512xf32>
    %17 = vector.shape_cast %16 : vector<1x1x512xf32> to vector<1x512xf32>
    %18 = vector.broadcast %17 : vector<1x512xf32> to vector<4x512xf32>
    %19 = arith.mulf %15, %18 : vector<4x512xf32>
    %20 = arith.truncf %19 : vector<4x512xf32> to vector<4x512xbf16>
    %c8 = arith.constant 8 : index
    %c0_11 = arith.constant 0 : index
    %21 = vector.load %arg10[%c8, %c0_11] : memref<54x512xbf16, #tpu.memory_space<vmem>>, vector<4x512xbf16>
    tpu.vector_store %arg10[%c8, %c0_11], %20 {strides = array<i32>} : memref<54x512xbf16, #tpu.memory_space<vmem>>, vector<4x512xbf16>,
    %c1_i32 = arith.constant 1 : i32
    %22 = tpu.dynamic_rotate %0 by %c1_i32 dim 1 : vector<4x512xf32>, i32 -> vector<4x512xf32>
    %c3 = arith.constant 3 : index
    %c0_12 = arith.constant 0 : index
    %c0_13 = arith.constant 0 : index
    %23 = vector.load %arg2[%c3, %c0_12, %c0_13] : memref<9x1x512xf32, #tpu.memory_space<vmem>>, vector<1x1x512xf32>
    %24 = vector.shape_cast %23 : vector<1x1x512xf32> to vector<1x512xf32>
    %25 = vector.broadcast %24 : vector<1x512xf32> to vector<4x512xf32>
    %26 = arith.mulf %22, %25 : vector<4x512xf32>
    %27 = arith.truncf %26 : vector<4x512xf32> to vector<4x512xbf16>
    %c12 = arith.constant 12 : index
    %c0_14 = arith.constant 0 : index
    %28 = vector.load %arg10[%c12, %c0_14] : memref<54x512xbf16, #tpu.memory_space<vmem>>, vector<4x512xbf16>
    tpu.vector_store %arg10[%c12, %c0_14], %27 {strides = array<i32>} : memref<54x512xbf16, #tpu.memory_space<vmem>>, vector<4x512xbf16>,
    %29 = arith.truncf %0 : vector<4x512xf32> to vector<4x512xbf16>
    %c16 = arith.constant 16 : index
    %c0_15 = arith.constant 0 : index
    %30 = vector.load %arg10[%c16, %c0_15] : memref<54x512xbf16, #tpu.memory_space<vmem>>, vector<4x512xbf16>
    tpu.vector_store %arg10[%c16, %c0_15], %29 {strides = array<i32>} : memref<54x512xbf16, #tpu.memory_space<vmem>>, vector<4x512xbf16>,
    %c511_i32 = arith.constant 511 : i32
    %31 = tpu.dynamic_rotate %0 by %c511_i32 dim 1 : vector<4x512xf32>, i32 -> vector<4x512xf32>
    %c5 = arith.constant 5 : index
    %c0_16 = arith.constant 0 : index
    %c0_17 = arith.constant 0 : index
    %32 = vector.load %arg2[%c5, %c0_16, %c0_17] : memref<9x1x512xf32, #tpu.memory_space<vmem>>, vector<1x1x512xf32>
    %33 = vector.shape_cast %32 : vector<1x1x512xf32> to vector<1x512xf32>
    %34 = vector.broadcast %33 : vector<1x512xf32> to vector<4x512xf32>
    %35 = arith.mulf %31, %34 : vector<4x512xf32>
    %36 = arith.truncf %35 : vector<4x512xf32> to vector<4x512xbf16>
    %c20 = arith.constant 20 : index
    %c0_18 = arith.constant 0 : index
    %37 = vector.load %arg10[%c20, %c0_18] : memref<54x512xbf16, #tpu.memory_space<vmem>>, vector<4x512xbf16>
    tpu.vector_store %arg10[%c20, %c0_18], %36 {strides = array<i32>} : memref<54x512xbf16, #tpu.memory_space<vmem>>, vector<4x512xbf16>,
    %c497_i32 = arith.constant 497 : i32
    %38 = tpu.dynamic_rotate %0 by %c497_i32 dim 1 : vector<4x512xf32>, i32 -> vector<4x512xf32>
    %c6 = arith.constant 6 : index
    %c0_19 = arith.constant 0 : index
    %c0_20 = arith.constant 0 : index
    %39 = vector.load %arg2[%c6, %c0_19, %c0_20] : memref<9x1x512xf32, #tpu.memory_space<vmem>>, vector<1x1x512xf32>
    %40 = vector.shape_cast %39 : vector<1x1x512xf32> to vector<1x512xf32>
    %41 = vector.broadcast %40 : vector<1x512xf32> to vector<4x512xf32>
    %42 = arith.mulf %38, %41 : vector<4x512xf32>
    %43 = arith.truncf %42 : vector<4x512xf32> to vector<4x512xbf16>
    %c24 = arith.constant 24 : index
    %c0_21 = arith.constant 0 : index
    %44 = vector.load %arg10[%c24, %c0_21] : memref<54x512xbf16, #tpu.memory_space<vmem>>, vector<4x512xbf16>
    tpu.vector_store %arg10[%c24, %c0_21], %43 {strides = array<i32>} : memref<54x512xbf16, #tpu.memory_space<vmem>>, vector<4x512xbf16>,
    %c496_i32 = arith.constant 496 : i32
    %45 = tpu.dynamic_rotate %0 by %c496_i32 dim 1 : vector<4x512xf32>, i32 -> vector<4x512xf32>
    %c7 = arith.constant 7 : index
    %c0_22 = arith.constant 0 : index
    %c0_23 = arith.constant 0 : index
    %46 = vector.load %arg2[%c7, %c0_22, %c0_23] : memref<9x1x512xf32, #tpu.memory_space<vmem>>, vector<1x1x512xf32>
    %47 = vector.shape_cast %46 : vector<1x1x512xf32> to vector<1x512xf32>
    %48 = vector.broadcast %47 : vector<1x512xf32> to vector<4x512xf32>
    %49 = arith.mulf %45, %48 : vector<4x512xf32>
    %50 = arith.truncf %49 : vector<4x512xf32> to vector<4x512xbf16>
    %c28 = arith.constant 28 : index
    %c0_24 = arith.constant 0 : index
    %51 = vector.load %arg10[%c28, %c0_24] : memref<54x512xbf16, #tpu.memory_space<vmem>>, vector<4x512xbf16>
    tpu.vector_store %arg10[%c28, %c0_24], %50 {strides = array<i32>} : memref<54x512xbf16, #tpu.memory_space<vmem>>, vector<4x512xbf16>,
    %c495_i32 = arith.constant 495 : i32
    %52 = tpu.dynamic_rotate %0 by %c495_i32 dim 1 : vector<4x512xf32>, i32 -> vector<4x512xf32>
    %c8_25 = arith.constant 8 : index
    %c0_26 = arith.constant 0 : index
    %c0_27 = arith.constant 0 : index
    %53 = vector.load %arg2[%c8_25, %c0_26, %c0_27] : memref<9x1x512xf32, #tpu.memory_space<vmem>>, vector<1x1x512xf32>
    %54 = vector.shape_cast %53 : vector<1x1x512xf32> to vector<1x512xf32>
    %55 = vector.broadcast %54 : vector<1x512xf32> to vector<4x512xf32>
    %56 = arith.mulf %52, %55 : vector<4x512xf32>
    %57 = arith.truncf %56 : vector<4x512xf32> to vector<4x512xbf16>
    %c32 = arith.constant 32 : index
    %c0_28 = arith.constant 0 : index
    %58 = vector.load %arg10[%c32, %c0_28] : memref<54x512xbf16, #tpu.memory_space<vmem>>, vector<4x512xbf16>
    tpu.vector_store %arg10[%c32, %c0_28], %57 {strides = array<i32>} : memref<54x512xbf16, #tpu.memory_space<vmem>>, vector<4x512xbf16>,
    %c0_29 = arith.constant 0 : index
    %c0_30 = arith.constant 0 : index
    %59 = vector.load %arg3[%c0_29, %c0_30] : memref<6x36xbf16, #tpu.memory_space<vmem>>, vector<6x36xbf16>
    %c0_31 = arith.constant 0 : index
    %c0_32 = arith.constant 0 : index
    %60 = vector.load %arg10[%c0_31, %c0_32] : memref<54x512xbf16, #tpu.memory_space<vmem>>, vector<36x512xbf16>
    %cst = arith.constant dense<0.000000e+00> : vector<6x512xf32>
    %61 = tpu.matmul %59, %60, %cst {dimension_numbers = #tpu.dot_dimension_numbers<[1], [0], [0], [1], [0, 0, 1, 1], [], []>} : vector<6x36xbf16>, vector<36x512xbf16>, vector<6x512xf32> -> vector<6x512xf32>
    %c0_33 = arith.constant 0 : index
    %c0_34 = arith.constant 0 : index
    %62 = vector.load %arg4[%c0_33, %c0_34] : memref<6x1xf32, #tpu.memory_space<vmem>>, vector<6x1xf32>
    %63 = vector.broadcast %62 : vector<6x1xf32> to vector<6x512xf32>
    %64 = arith.addf %61, %63 : vector<6x512xf32>
    %cst_35 = arith.constant 0.00999999977 : f32
    %65 = vector.broadcast %cst_35 : f32 to vector<6x512xf32>
    %66 = arith.mulf %65, %64 : vector<6x512xf32>
    %67 = arith.maximumf %64, %66 : vector<6x512xf32>
    %c17_i32_36 = arith.constant 17 : i32
    %68 = tpu.dynamic_rotate %67 by %c17_i32_36 dim 1 : vector<6x512xf32>, i32 -> vector<6x512xf32>
    %c0_37 = arith.constant 0 : index
    %c0_38 = arith.constant 0 : index
    %c0_39 = arith.constant 0 : index
    %69 = vector.load %arg2[%c0_37, %c0_38, %c0_39] : memref<9x1x512xf32, #tpu.memory_space<vmem>>, vector<1x1x512xf32>
    %70 = vector.shape_cast %69 : vector<1x1x512xf32> to vector<1x512xf32>
    %71 = vector.broadcast %70 : vector<1x512xf32> to vector<6x512xf32>
    %72 = arith.mulf %68, %71 : vector<6x512xf32>
    %73 = arith.truncf %72 : vector<6x512xf32> to vector<6x512xbf16>
    %c0_40 = arith.constant 0 : index
    %c0_41 = arith.constant 0 : index
    %74 = vector.load %arg10[%c0_40, %c0_41] : memref<54x512xbf16, #tpu.memory_space<vmem>>, vector<6x512xbf16>
    tpu.vector_store %arg10[%c0_40, %c0_41], %73 {strides = array<i32>} : memref<54x512xbf16, #tpu.memory_space<vmem>>, vector<6x512xbf16>,
    %c16_i32_42 = arith.constant 16 : i32
    %75 = tpu.dynamic_rotate %67 by %c16_i32_42 dim 1 : vector<6x512xf32>, i32 -> vector<6x512xf32>
    %c1_43 = arith.constant 1 : index
    %c0_44 = arith.constant 0 : index
    %c0_45 = arith.constant 0 : index
    %76 = vector.load %arg2[%c1_43, %c0_44, %c0_45] : memref<9x1x512xf32, #tpu.memory_space<vmem>>, vector<1x1x512xf32>
    %77 = vector.shape_cast %76 : vector<1x1x512xf32> to vector<1x512xf32>
    %78 = vector.broadcast %77 : vector<1x512xf32> to vector<6x512xf32>
    %79 = arith.mulf %75, %78 : vector<6x512xf32>
    %80 = arith.truncf %79 : vector<6x512xf32> to vector<6x512xbf16>
    %c6_46 = arith.constant 6 : index
    %c0_47 = arith.constant 0 : index
    %81 = vector.load %arg10[%c6_46, %c0_47] : memref<54x512xbf16, #tpu.memory_space<vmem>>, vector<6x512xbf16>
    tpu.vector_store %arg10[%c6_46, %c0_47], %80 {strides = array<i32>} : memref<54x512xbf16, #tpu.memory_space<vmem>>, vector<6x512xbf16>,
    %c15_i32_48 = arith.constant 15 : i32
    %82 = tpu.dynamic_rotate %67 by %c15_i32_48 dim 1 : vector<6x512xf32>, i32 -> vector<6x512xf32>
    %c2_49 = arith.constant 2 : index
    %c0_50 = arith.constant 0 : index
    %c0_51 = arith.constant 0 : index
    %83 = vector.load %arg2[%c2_49, %c0_50, %c0_51] : memref<9x1x512xf32, #tpu.memory_space<vmem>>, vector<1x1x512xf32>
    %84 = vector.shape_cast %83 : vector<1x1x512xf32> to vector<1x512xf32>
    %85 = vector.broadcast %84 : vector<1x512xf32> to vector<6x512xf32>
    %86 = arith.mulf %82, %85 : vector<6x512xf32>
    %87 = arith.truncf %86 : vector<6x512xf32> to vector<6x512xbf16>
    %c12_52 = arith.constant 12 : index
    %c0_53 = arith.constant 0 : index
    %88 = vector.load %arg10[%c12_52, %c0_53] : memref<54x512xbf16, #tpu.memory_space<vmem>>, vector<6x512xbf16>
    tpu.vector_store %arg10[%c12_52, %c0_53], %87 {strides = array<i32>} : memref<54x512xbf16, #tpu.memory_space<vmem>>, vector<6x512xbf16>,
    %c1_i32_54 = arith.constant 1 : i32
    %89 = tpu.dynamic_rotate %67 by %c1_i32_54 dim 1 : vector<6x512xf32>, i32 -> vector<6x512xf32>
    %c3_55 = arith.constant 3 : index
    %c0_56 = arith.constant 0 : index
    %c0_57 = arith.constant 0 : index
    %90 = vector.load %arg2[%c3_55, %c0_56, %c0_57] : memref<9x1x512xf32, #tpu.memory_space<vmem>>, vector<1x1x512xf32>
    %91 = vector.shape_cast %90 : vector<1x1x512xf32> to vector<1x512xf32>
    %92 = vector.broadcast %91 : vector<1x512xf32> to vector<6x512xf32>
    %93 = arith.mulf %89, %92 : vector<6x512xf32>
    %94 = arith.truncf %93 : vector<6x512xf32> to vector<6x512xbf16>
    %c18 = arith.constant 18 : index
    %c0_58 = arith.constant 0 : index
    %95 = vector.load %arg10[%c18, %c0_58] : memref<54x512xbf16, #tpu.memory_space<vmem>>, vector<6x512xbf16>
    tpu.vector_store %arg10[%c18, %c0_58], %94 {strides = array<i32>} : memref<54x512xbf16, #tpu.memory_space<vmem>>, vector<6x512xbf16>,
    %96 = arith.truncf %67 : vector<6x512xf32> to vector<6x512xbf16>
    %c24_59 = arith.constant 24 : index
    %c0_60 = arith.constant 0 : index
    %97 = vector.load %arg10[%c24_59, %c0_60] : memref<54x512xbf16, #tpu.memory_space<vmem>>, vector<6x512xbf16>
    tpu.vector_store %arg10[%c24_59, %c0_60], %96 {strides = array<i32>} : memref<54x512xbf16, #tpu.memory_space<vmem>>, vector<6x512xbf16>,
    %c511_i32_61 = arith.constant 511 : i32
    %98 = tpu.dynamic_rotate %67 by %c511_i32_61 dim 1 : vector<6x512xf32>, i32 -> vector<6x512xf32>
    %c5_62 = arith.constant 5 : index
    %c0_63 = arith.constant 0 : index
    %c0_64 = arith.constant 0 : index
    %99 = vector.load %arg2[%c5_62, %c0_63, %c0_64] : memref<9x1x512xf32, #tpu.memory_space<vmem>>, vector<1x1x512xf32>
    %100 = vector.shape_cast %99 : vector<1x1x512xf32> to vector<1x512xf32>
    %101 = vector.broadcast %100 : vector<1x512xf32> to vector<6x512xf32>
    %102 = arith.mulf %98, %101 : vector<6x512xf32>
    %103 = arith.truncf %102 : vector<6x512xf32> to vector<6x512xbf16>
    %c30 = arith.constant 30 : index
    %c0_65 = arith.constant 0 : index
    %104 = vector.load %arg10[%c30, %c0_65] : memref<54x512xbf16, #tpu.memory_space<vmem>>, vector<6x512xbf16>
    tpu.vector_store %arg10[%c30, %c0_65], %103 {strides = array<i32>} : memref<54x512xbf16, #tpu.memory_space<vmem>>, vector<6x512xbf16>,
    %c497_i32_66 = arith.constant 497 : i32
    %105 = tpu.dynamic_rotate %67 by %c497_i32_66 dim 1 : vector<6x512xf32>, i32 -> vector<6x512xf32>
    %c6_67 = arith.constant 6 : index
    %c0_68 = arith.constant 0 : index
    %c0_69 = arith.constant 0 : index
    %106 = vector.load %arg2[%c6_67, %c0_68, %c0_69] : memref<9x1x512xf32, #tpu.memory_space<vmem>>, vector<1x1x512xf32>
    %107 = vector.shape_cast %106 : vector<1x1x512xf32> to vector<1x512xf32>
    %108 = vector.broadcast %107 : vector<1x512xf32> to vector<6x512xf32>
    %109 = arith.mulf %105, %108 : vector<6x512xf32>
    %110 = arith.truncf %109 : vector<6x512xf32> to vector<6x512xbf16>
    %c36 = arith.constant 36 : index
    %c0_70 = arith.constant 0 : index
    %111 = vector.load %arg10[%c36, %c0_70] : memref<54x512xbf16, #tpu.memory_space<vmem>>, vector<6x512xbf16>
    tpu.vector_store %arg10[%c36, %c0_70], %110 {strides = array<i32>} : memref<54x512xbf16, #tpu.memory_space<vmem>>, vector<6x512xbf16>,
    %c496_i32_71 = arith.constant 496 : i32
    %112 = tpu.dynamic_rotate %67 by %c496_i32_71 dim 1 : vector<6x512xf32>, i32 -> vector<6x512xf32>
    %c7_72 = arith.constant 7 : index
    %c0_73 = arith.constant 0 : index
    %c0_74 = arith.constant 0 : index
    %113 = vector.load %arg2[%c7_72, %c0_73, %c0_74] : memref<9x1x512xf32, #tpu.memory_space<vmem>>, vector<1x1x512xf32>
    %114 = vector.shape_cast %113 : vector<1x1x512xf32> to vector<1x512xf32>
    %115 = vector.broadcast %114 : vector<1x512xf32> to vector<6x512xf32>
    %116 = arith.mulf %112, %115 : vector<6x512xf32>
    %117 = arith.truncf %116 : vector<6x512xf32> to vector<6x512xbf16>
    %c42 = arith.constant 42 : index
    %c0_75 = arith.constant 0 : index
    %118 = vector.load %arg10[%c42, %c0_75] : memref<54x512xbf16, #tpu.memory_space<vmem>>, vector<6x512xbf16>
    tpu.vector_store %arg10[%c42, %c0_75], %117 {strides = array<i32>} : memref<54x512xbf16, #tpu.memory_space<vmem>>, vector<6x512xbf16>,
    %c495_i32_76 = arith.constant 495 : i32
    %119 = tpu.dynamic_rotate %67 by %c495_i32_76 dim 1 : vector<6x512xf32>, i32 -> vector<6x512xf32>
    %c8_77 = arith.constant 8 : index
    %c0_78 = arith.constant 0 : index
    %c0_79 = arith.constant 0 : index
    %120 = vector.load %arg2[%c8_77, %c0_78, %c0_79] : memref<9x1x512xf32, #tpu.memory_space<vmem>>, vector<1x1x512xf32>
    %121 = vector.shape_cast %120 : vector<1x1x512xf32> to vector<1x512xf32>
    %122 = vector.broadcast %121 : vector<1x512xf32> to vector<6x512xf32>
    %123 = arith.mulf %119, %122 : vector<6x512xf32>
    %124 = arith.truncf %123 : vector<6x512xf32> to vector<6x512xbf16>
    %c48 = arith.constant 48 : index
    %c0_80 = arith.constant 0 : index
    %125 = vector.load %arg10[%c48, %c0_80] : memref<54x512xbf16, #tpu.memory_space<vmem>>, vector<6x512xbf16>
    tpu.vector_store %arg10[%c48, %c0_80], %124 {strides = array<i32>} : memref<54x512xbf16, #tpu.memory_space<vmem>>, vector<6x512xbf16>,
    %c0_81 = arith.constant 0 : index
    %c0_82 = arith.constant 0 : index
    %126 = vector.load %arg5[%c0_81, %c0_82] : memref<6x54xbf16, #tpu.memory_space<vmem>>, vector<6x54xbf16>
    %c0_83 = arith.constant 0 : index
    %c0_84 = arith.constant 0 : index
    %127 = vector.load %arg10[%c0_83, %c0_84] : memref<54x512xbf16, #tpu.memory_space<vmem>>, vector<54x512xbf16>
    %cst_85 = arith.constant dense<0.000000e+00> : vector<6x512xf32>
    %128 = tpu.matmul %126, %127, %cst_85 {dimension_numbers = #tpu.dot_dimension_numbers<[1], [0], [0], [1], [0, 0, 1, 1], [], []>} : vector<6x54xbf16>, vector<54x512xbf16>, vector<6x512xf32> -> vector<6x512xf32>
    %c0_86 = arith.constant 0 : index
    %c0_87 = arith.constant 0 : index
    %129 = vector.load %arg6[%c0_86, %c0_87] : memref<6x1xf32, #tpu.memory_space<vmem>>, vector<6x1xf32>
    %130 = vector.broadcast %129 : vector<6x1xf32> to vector<6x512xf32>
    %131 = arith.addf %128, %130 : vector<6x512xf32>
    %cst_88 = arith.constant 0.00999999977 : f32
    %132 = vector.broadcast %cst_88 : f32 to vector<6x512xf32>
    %133 = arith.mulf %132, %131 : vector<6x512xf32>
    %134 = arith.maximumf %131, %133 : vector<6x512xf32>
    %c0_89 = arith.constant 0 : index
    %c0_90 = arith.constant 0 : index
    %135 = vector.load %arg7[%c0_89, %c0_90] : memref<6x4xbf16, #tpu.memory_space<vmem>>, vector<6x4xbf16>
    %136 = arith.truncf %0 : vector<4x512xf32> to vector<4x512xbf16>
    %cst_91 = arith.constant dense<0.000000e+00> : vector<6x512xf32>
    %137 = tpu.matmul %135, %136, %cst_91 {dimension_numbers = #tpu.dot_dimension_numbers<[1], [0], [0], [1], [0, 0, 1, 1], [], []>} : vector<6x4xbf16>, vector<4x512xbf16>, vector<6x512xf32> -> vector<6x512xf32>
    %c0_92 = arith.constant 0 : index
    %c0_93 = arith.constant 0 : index
    %138 = vector.load %arg8[%c0_92, %c0_93] : memref<6x1xf32, #tpu.memory_space<vmem>>, vector<6x1xf32>
    %139 = vector.broadcast %138 : vector<6x1xf32> to vector<6x512xf32>
    %140 = arith.addf %137, %139 : vector<6x512xf32>
    %141 = arith.addf %134, %140 : vector<6x512xf32>
    %c0_94 = arith.constant 0 : index
    %c0_95 = arith.constant 0 : index
    %142 = vector.load %arg9[%c0_94, %c0_95] : memref<6x512xf32, #tpu.memory_space<vmem>>, vector<6x512xf32>
    tpu.vector_store %arg9[%c0_94, %c0_95], %141 {strides = array<i32>} : memref<6x512xf32, #tpu.memory_space<vmem>>, vector<6x512xf32>,
    return
  }
  func.func @transform_0(%arg0: i32) -> (i32, i32) {
    %c0_i32 = arith.constant 0 : i32
    %c0_i32_0 = arith.constant 0 : i32
    return %c0_i32, %arg0 : i32, i32
  }
  func.func @transform_1(%arg0: i32) -> (i32, i32, i32) {
    %c0_i32 = arith.constant 0 : i32
    %c0_i32_0 = arith.constant 0 : i32
    %c0_i32_1 = arith.constant 0 : i32
    %c0_i32_2 = arith.constant 0 : i32
    return %c0_i32, %c0_i32_0, %c0_i32_1 : i32, i32, i32
  }
  func.func @transform_2(%arg0: i32) -> (i32, i32) {
    %c0_i32 = arith.constant 0 : i32
    %c0_i32_0 = arith.constant 0 : i32
    %c0_i32_1 = arith.constant 0 : i32
    return %c0_i32, %c0_i32_0 : i32, i32
  }
  func.func @transform_3(%arg0: i32) -> (i32, i32) {
    %c0_i32 = arith.constant 0 : i32
    %c0_i32_0 = arith.constant 0 : i32
    %c0_i32_1 = arith.constant 0 : i32
    return %c0_i32, %c0_i32_0 : i32, i32
  }
  func.func @transform_4(%arg0: i32) -> (i32, i32) {
    %c0_i32 = arith.constant 0 : i32
    %c0_i32_0 = arith.constant 0 : i32
    %c0_i32_1 = arith.constant 0 : i32
    return %c0_i32, %c0_i32_0 : i32, i32
  }
  func.func @transform_5(%arg0: i32) -> (i32, i32) {
    %c0_i32 = arith.constant 0 : i32
    %c0_i32_0 = arith.constant 0 : i32
    %c0_i32_1 = arith.constant 0 : i32
    return %c0_i32, %c0_i32_0 : i32, i32
  }
  func.func @transform_6(%arg0: i32) -> (i32, i32) {
    %c0_i32 = arith.constant 0 : i32
    %c0_i32_0 = arith.constant 0 : i32
    %c0_i32_1 = arith.constant 0 : i32
    return %c0_i32, %c0_i32_0 : i32, i32
  }
  func.func @transform_7(%arg0: i32) -> (i32, i32) {
    %c0_i32 = arith.constant 0 : i32
    %c0_i32_0 = arith.constant 0 : i32
    %c0_i32_1 = arith.constant 0 : i32
    return %c0_i32, %c0_i32_0 : i32, i32
  }
  func.func @transform_8(%arg0: i32) -> (i32, i32) {
    %c0_i32 = arith.constant 0 : i32
    %c0_i32_0 = arith.constant 0 : i32
    return %c0_i32, %arg0 : i32, i32
  }
}

</mosaic_0001>

<llo_original>
// kernel: _lambda_.1
$region0: #{_lambda_.1}
  #allocation0 [shape = 'u32[]', space=smem, size = 0x4, offset = 0x4, fixed_abs, tag = 'smem constant byte address 0x4 - core index']
  #allocation1 [shape = 'u32[144,128]{1,0:T(1,128)}', space=vmem, size = 0x12000, scoped, tag = 'internal scratch']
  #allocation2 [shape = 'bf16[54,512]{1,0:T(8,128)(2,1)}', space=vmem, size = 0xe000, scoped, tag = 'scratch operand']
  %s0 = inlined_call_operand.vmem [shape: f32[4,512], index: 0, kind: input, shape index: {}]
  %s1 = inlined_call_operand.vmem [shape: f32[9,1,512], index: 1, kind: input, shape index: {}]
  %s2 = inlined_call_operand.vmem [shape: bf16[6,36], index: 2, kind: input, shape index: {}]
  %s3 = inlined_call_operand.vmem [shape: f32[6,1], index: 3, kind: input, shape index: {}]
  %s4 = inlined_call_operand.vmem [shape: bf16[6,54], index: 4, kind: input, shape index: {}]
  %s5 = inlined_call_operand.vmem [shape: f32[6,1], index: 5, kind: input, shape index: {}]
  %s6 = inlined_call_operand.vmem [shape: bf16[6,4], index: 6, kind: input, shape index: {}]
  %s7 = inlined_call_operand.vmem [shape: f32[6,1], index: 7, kind: input, shape index: {}]
  %s8 = inlined_call_operand.vmem [shape: f32[6,512], index: 8, kind: output, shape index: {}]
  %s9 = sld [smem:[#allocation0]]
  $region42: #{_lambda_.1} parent=0
    _
  %s11 = ssub.s32 1, %s9
  %s12 = scalar_select 0, %s11, %s9
  // Predicated region
  $region2: #{_lambda_.1} parent=0 // pred_check
    _
  $region3: #{_lambda_.1} parent=0 // pred_check_branch
    %14 = sbr.rel (0) target = $region5
  $region4: #{_lambda_.1} parent=0 // pred_region
    _
  $region5: #{_lambda_.1} parent=0 // pred_fallthru
    _
  // Predicated region
  $region6: #{_lambda_.1} parent=0 // pred_check
    _
  $region7: #{_lambda_.1} parent=0 // pred_check_branch
    %16 = sbr.rel (0) target = $region9
  $region8: #{_lambda_.1} parent=0 // pred_region
    _
  $region9: #{_lambda_.1} parent=0 // pred_fallthru
    _
  // Predicated region
  $region10: #{_lambda_.1} parent=0 // pred_check
    _
  $region11: #{_lambda_.1} parent=0 // pred_check_branch
    %18 = sbr.rel (0) target = $region13
  $region12: #{_lambda_.1} parent=0 // pred_region
    _
  $region13: #{_lambda_.1} parent=0 // pred_fallthru
    _
  // Predicated region
  $region14: #{_lambda_.1} parent=0 // pred_check
    _
  $region15: #{_lambda_.1} parent=0 // pred_check_branch
    %20 = sbr.rel (0) target = $region17
  $region16: #{_lambda_.1} parent=0 // pred_region
    _
  $region17: #{_lambda_.1} parent=0 // pred_fallthru
    _
  // Predicated region
  $region18: #{_lambda_.1} parent=0 // pred_check
    _
  $region19: #{_lambda_.1} parent=0 // pred_check_branch
    %22 = sbr.rel (0) target = $region21
  $region20: #{_lambda_.1} parent=0 // pred_region
    _
  $region21: #{_lambda_.1} parent=0 // pred_fallthru
    _
  // Predicated region
  $region22: #{_lambda_.1} parent=0 // pred_check
    _
  $region23: #{_lambda_.1} parent=0 // pred_check_branch
    %24 = sbr.rel (0) target = $region25
  $region24: #{_lambda_.1} parent=0 // pred_region
    _
  $region25: #{_lambda_.1} parent=0 // pred_fallthru
    _
  // Predicated region
  $region26: #{_lambda_.1} parent=0 // pred_check
    _
  $region27: #{_lambda_.1} parent=0 // pred_check_branch
    %26 = sbr.rel (0) target = $region29
  $region28: #{_lambda_.1} parent=0 // pred_region
    _
  $region29: #{_lambda_.1} parent=0 // pred_fallthru
    _
  // Predicated region
  $region30: #{_lambda_.1} parent=0 // pred_check
    _
  $region31: #{_lambda_.1} parent=0 // pred_check_branch
    %28 = sbr.rel (0) target = $region33
  $region32: #{_lambda_.1} parent=0 // pred_region
    _
  $region33: #{_lambda_.1} parent=0 // pred_fallthru
    _
  %v30 = vld [vmem:[%s0] sm:$0xff]
  %v31 = vld [vmem:[%s0 + $0x8] sm:$0xff]
  %v34 = vcombine.high %v30, %v30
  %v35 = vcombine.high %v31, %v31
  %38 = vrot.lane.b32.xlu0 %v30, 17
  %v39 = vpop.permute.xlu0 %38
  %40 = vrot.lane.b32.xlu0 %v34, 17
  %v41 = vpop.permute.xlu0 %40
  %42 = vrot.lane.b32.xlu0 %v31, 17
  %v43 = vpop.permute.xlu0 %42
  %44 = vrot.lane.b32.xlu0 %v35, 17
  %v45 = vpop.permute.xlu0 %44
  %v46 = vlaneseq
  %v47 = vand.u32 %v46, 127
  %vm48 = vcmp.lt.s32.totalorder %v47, 17
  %v49 = vsel %vm48, %v43, %v45
  %v50 = vsel %vm48, %v41, %v43
  %v51 = vsel %vm48, %v39, %v41
  %v52 = vsel %vm48, %v45, %v39
  %v53 = vld [vmem:[%s1] sm:$0xf]
  %v55 = vlaneseq
  %v56 = vshrl.u32 %v55, 7
  %v57 = vsub.s32 0, %v56
  %v58 = vrot.slane %v53, %v57
  %v59 = vlaneseq
  %v60 = vshrl.u32 %v59, 7
  %v61 = vsub.s32 1, %v60
  %v62 = vrot.slane %v53, %v61
  %v63 = vlaneseq
  %v64 = vshrl.u32 %v63, 7
  %v65 = vsub.s32 2, %v64
  %v66 = vrot.slane %v53, %v65
  %v67 = vlaneseq
  %v68 = vshrl.u32 %v67, 7
  %v69 = vsub.s32 3, %v68
  %v70 = vrot.slane %v53, %v69
  %v75 = vmul.f32 %v52, %v58
  %v76 = vmul.f32 %v51, %v62
  %v77 = vmul.f32 %v50, %v66
  %v78 = vmul.f32 %v49, %v70
  %v79 = vpack.c.bf16 %v75, %v75
  %v80 = vpack.c.bf16 %v76, %v76
  %v81 = vpack.c.bf16 %v77, %v77
  %v82 = vpack.c.bf16 %v78, %v78
  %v87 = vunpack.c.l.b16 %v79
  %v88 = vunpack.c.l.b16 %v80
  %v89 = vunpack.c.l.b16 %v81
  %v90 = vunpack.c.l.b16 %v82
  %v91 = vpack.c.b16 %v88, %v87
  %v92 = vpack.c.b16 %v90, %v89
  %95 = vst [vmem:[#allocation2] sm:$0x33] %v91
  %96 = vst [vmem:[#allocation2 + $0x8] sm:$0x33] %v92
  %97 = vrot.lane.b32.xlu0 %v30, 16
  %v98 = vpop.permute.xlu0 %97
  %99 = vrot.lane.b32.xlu0 %v34, 16
  %v100 = vpop.permute.xlu0 %99
  %101 = vrot.lane.b32.xlu0 %v31, 16
  %v102 = vpop.permute.xlu0 %101
  %103 = vrot.lane.b32.xlu0 %v35, 16
  %v104 = vpop.permute.xlu0 %103
  %vm105 = vcmp.lt.s32.totalorder %v47, 16
  %v106 = vsel %vm105, %v102, %v104
  %v107 = vsel %vm105, %v100, %v102
  %v108 = vsel %vm105, %v98, %v100
  %v109 = vsel %vm105, %v104, %v98
  %s110 = scalar_lea.vmem %s1, 4
  %v111 = vld [vmem:[%s110] sm:$0xf]
  %v113 = vlaneseq
  %v114 = vshrl.u32 %v113, 7
  %v115 = vsub.s32 0, %v114
  %v116 = vrot.slane %v111, %v115
  %v117 = vlaneseq
  %v118 = vshrl.u32 %v117, 7
  %v119 = vsub.s32 1, %v118
  %v120 = vrot.slane %v111, %v119
  %v121 = vlaneseq
  %v122 = vshrl.u32 %v121, 7
  %v123 = vsub.s32 2, %v122
  %v124 = vrot.slane %v111, %v123
  %v125 = vlaneseq
  %v126 = vshrl.u32 %v125, 7
  %v127 = vsub.s32 3, %v126
  %v128 = vrot.slane %v111, %v127
  %v133 = vmul.f32 %v109, %v116
  %v134 = vmul.f32 %v108, %v120
  %v135 = vmul.f32 %v107, %v124
  %v136 = vmul.f32 %v106, %v128
  %v137 = vpack.c.bf16 %v133, %v133
  %v138 = vpack.c.bf16 %v134, %v134
  %v139 = vpack.c.bf16 %v135, %v135
  %v140 = vpack.c.bf16 %v136, %v136
  %v145 = vunpack.c.l.b16 %v137
  %v146 = vunpack.c.l.b16 %v138
  %v147 = vunpack.c.l.b16 %v139
  %v148 = vunpack.c.l.b16 %v140
  %v149 = vpack.c.b16 %v146, %v145
  %v150 = vpack.c.b16 %v148, %v147
  %v151 = vrot.slane %v149, 6
  %v152 = vrot.slane %v150, 6
  %155 = vst [vmem:[#allocation2] sm:$0xcc] %v151
  %156 = vst [vmem:[#allocation2 + $0x8] sm:$0xcc] %v152
  %157 = vrot.lane.b32.xlu0 %v30, 15
  %v158 = vpop.permute.xlu0 %157
  %159 = vrot.lane.b32.xlu0 %v34, 15
  %v160 = vpop.permute.xlu0 %159
  %161 = vrot.lane.b32.xlu0 %v31, 15
  %v162 = vpop.permute.xlu0 %161
  %163 = vrot.lane.b32.xlu0 %v35, 15
  %v164 = vpop.permute.xlu0 %163
  %vm165 = vcmp.lt.s32.totalorder %v47, 15
  %v166 = vsel %vm165, %v162, %v164
  %v167 = vsel %vm165, %v160, %v162
  %v168 = vsel %vm165, %v158, %v160
  %v169 = vsel %vm165, %v164, %v158
  %s170 = scalar_lea.vmem %s1, 8
  %v171 = vld [vmem:[%s170] sm:$0xf]
  %v173 = vlaneseq
  %v174 = vshrl.u32 %v173, 7
  %v175 = vsub.s32 0, %v174
  %v176 = vrot.slane %v171, %v175
  %v177 = vlaneseq
  %v178 = vshrl.u32 %v177, 7
  %v179 = vsub.s32 1, %v178
  %v180 = vrot.slane %v171, %v179
  %v181 = vlaneseq
  %v182 = vshrl.u32 %v181, 7
  %v183 = vsub.s32 2, %v182
  %v184 = vrot.slane %v171, %v183
  %v185 = vlaneseq
  %v186 = vshrl.u32 %v185, 7
  %v187 = vsub.s32 3, %v186
  %v188 = vrot.slane %v171, %v187
  %v193 = vmul.f32 %v169, %v176
  %v194 = vmul.f32 %v168, %v180
  %v195 = vmul.f32 %v167, %v184
  %v196 = vmul.f32 %v166, %v188
  %v197 = vpack.c.bf16 %v193, %v193
  %v198 = vpack.c.bf16 %v194, %v194
  %v199 = vpack.c.bf16 %v195, %v195
  %v200 = vpack.c.bf16 %v196, %v196
  %v205 = vunpack.c.l.b16 %v197
  %v206 = vunpack.c.l.b16 %v198
  %v207 = vunpack.c.l.b16 %v199
  %v208 = vunpack.c.l.b16 %v200
  %v209 = vpack.c.b16 %v206, %v205
  %v210 = vpack.c.b16 %v208, %v207
  %213 = vst [vmem:[#allocation2 + $0x10] sm:$0x33] %v209
  %214 = vst [vmem:[#allocation2 + $0x18] sm:$0x33] %v210
  %215 = vrot.lane.b32.xlu0 %v30, 1
  %v216 = vpop.permute.xlu0 %215
  %217 = vrot.lane.b32.xlu0 %v34, 1
  %v218 = vpop.permute.xlu0 %217
  %219 = vrot.lane.b32.xlu0 %v31, 1
  %v220 = vpop.permute.xlu0 %219
  %221 = vrot.lane.b32.xlu0 %v35, 1
  %v222 = vpop.permute.xlu0 %221
  %vm223 = vcmp.lt.s32.totalorder %v47, 1
  %v224 = vsel %vm223, %v220, %v222
  %v225 = vsel %vm223, %v218, %v220
  %v226 = vsel %vm223, %v216, %v218
  %v227 = vsel %vm223, %v222, %v216
  %s228 = scalar_lea.vmem %s1, 12
  %v229 = vld [vmem:[%s228] sm:$0xf]
  %v231 = vlaneseq
  %v232 = vshrl.u32 %v231, 7
  %v233 = vsub.s32 0, %v232
  %v234 = vrot.slane %v229, %v233
  %v235 = vlaneseq
  %v236 = vshrl.u32 %v235, 7
  %v237 = vsub.s32 1, %v236
  %v238 = vrot.slane %v229, %v237
  %v239 = vlaneseq
  %v240 = vshrl.u32 %v239, 7
  %v241 = vsub.s32 2, %v240
  %v242 = vrot.slane %v229, %v241
  %v243 = vlaneseq
  %v244 = vshrl.u32 %v243, 7
  %v245 = vsub.s32 3, %v244
  %v246 = vrot.slane %v229, %v245
  %v251 = vmul.f32 %v227, %v234
  %v252 = vmul.f32 %v226, %v238
  %v253 = vmul.f32 %v225, %v242
  %v254 = vmul.f32 %v224, %v246
  %v255 = vpack.c.bf16 %v251, %v251
  %v256 = vpack.c.bf16 %v252, %v252
  %v257 = vpack.c.bf16 %v253, %v253
  %v258 = vpack.c.bf16 %v254, %v254
  %v263 = vunpack.c.l.b16 %v255
  %v264 = vunpack.c.l.b16 %v256
  %v265 = vunpack.c.l.b16 %v257
  %v266 = vunpack.c.l.b16 %v258
  %v267 = vpack.c.b16 %v264, %v263
  %v268 = vpack.c.b16 %v266, %v265
  %v269 = vrot.slane %v267, 6
  %v270 = vrot.slane %v268, 6
  %273 = vst [vmem:[#allocation2 + $0x10] sm:$0xcc] %v269
  %274 = vst [vmem:[#allocation2 + $0x18] sm:$0xcc] %v270
  %v275 = vpack.c.bf16 %v30, %v30
  %v276 = vpack.c.bf16 %v34, %v34
  %v277 = vpack.c.bf16 %v31, %v31
  %v278 = vpack.c.bf16 %v35, %v35
  %v283 = vunpack.c.l.b16 %v275
  %v284 = vunpack.c.l.b16 %v276
  %v285 = vunpack.c.l.b16 %v277
  %v286 = vunpack.c.l.b16 %v278
  %v287 = vpack.c.b16 %v284, %v283
  %v288 = vpack.c.b16 %v286, %v285
  %291 = vst [vmem:[#allocation2 + $0x20] sm:$0x33] %v287
  %292 = vst [vmem:[#allocation2 + $0x28] sm:$0x33] %v288
  %293 = vrot.lane.b32.xlu0 %v30, 127
  %v294 = vpop.permute.xlu0 %293
  %295 = vrot.lane.b32.xlu0 %v34, 127
  %v296 = vpop.permute.xlu0 %295
  %297 = vrot.lane.b32.xlu0 %v31, 127
  %v298 = vpop.permute.xlu0 %297
  %299 = vrot.lane.b32.xlu0 %v35, 127
  %v300 = vpop.permute.xlu0 %299
  %vm301 = vcmp.lt.s32.totalorder %v47, 127
  %v302 = vsel %vm301, %v298, %v300
  %v303 = vsel %vm301, %v296, %v298
  %v304 = vsel %vm301, %v294, %v296
  %v305 = vsel %vm301, %v300, %v294
  %s306 = scalar_lea.vmem %s1, 20
  %v307 = vld [vmem:[%s306] sm:$0xf]
  %v309 = vlaneseq
  %v310 = vshrl.u32 %v309, 7
  %v311 = vsub.s32 0, %v310
  %v312 = vrot.slane %v307, %v311
  %v313 = vlaneseq
  %v314 = vshrl.u32 %v313, 7
  %v315 = vsub.s32 1, %v314
  %v316 = vrot.slane %v307, %v315
  %v317 = vlaneseq
  %v318 = vshrl.u32 %v317, 7
  %v319 = vsub.s32 2, %v318
  %v320 = vrot.slane %v307, %v319
  %v321 = vlaneseq
  %v322 = vshrl.u32 %v321, 7
  %v323 = vsub.s32 3, %v322
  %v324 = vrot.slane %v307, %v323
  %v329 = vmul.f32 %v304, %v312
  %v330 = vmul.f32 %v303, %v316
  %v331 = vmul.f32 %v302, %v320
  %v332 = vmul.f32 %v305, %v324
  %v333 = vpack.c.bf16 %v329, %v329
  %v334 = vpack.c.bf16 %v330, %v330
  %v335 = vpack.c.bf16 %v331, %v331
  %v336 = vpack.c.bf16 %v332, %v332
  %v341 = vunpack.c.l.b16 %v333
  %v342 = vunpack.c.l.b16 %v334
  %v343 = vunpack.c.l.b16 %v335
  %v344 = vunpack.c.l.b16 %v336
  %v345 = vpack.c.b16 %v342, %v341
  %v346 = vpack.c.b16 %v344, %v343
  %v347 = vrot.slane %v345, 6
  %v348 = vrot.slane %v346, 6
  %351 = vst [vmem:[#allocation2 + $0x20] sm:$0xcc] %v347
  %352 = vst [vmem:[#allocation2 + $0x28] sm:$0xcc] %v348
  %353 = vrot.lane.b32.xlu0 %v30, 113
  %v354 = vpop.permute.xlu0 %353
  %355 = vrot.lane.b32.xlu0 %v34, 113
  %v356 = vpop.permute.xlu0 %355
  %357 = vrot.lane.b32.xlu0 %v31, 113
  %v358 = vpop.permute.xlu0 %357
  %359 = vrot.lane.b32.xlu0 %v35, 113
  %v360 = vpop.permute.xlu0 %359
  %vm361 = vcmp.lt.s32.totalorder %v47, 113
  %v362 = vsel %vm361, %v358, %v360
  %v363 = vsel %vm361, %v356, %v358
  %v364 = vsel %vm361, %v354, %v356
  %v365 = vsel %vm361, %v360, %v354
  %s366 = scalar_lea.vmem %s1, 24
  %v367 = vld [vmem:[%s366] sm:$0xf]
  %v369 = vlaneseq
  %v370 = vshrl.u32 %v369, 7
  %v371 = vsub.s32 0, %v370
  %v372 = vrot.slane %v367, %v371
  %v373 = vlaneseq
  %v374 = vshrl.u32 %v373, 7
  %v375 = vsub.s32 1, %v374
  %v376 = vrot.slane %v367, %v375
  %v377 = vlaneseq
  %v378 = vshrl.u32 %v377, 7
  %v379 = vsub.s32 2, %v378
  %v380 = vrot.slane %v367, %v379
  %v381 = vlaneseq
  %v382 = vshrl.u32 %v381, 7
  %v383 = vsub.s32 3, %v382
  %v384 = vrot.slane %v367, %v383
  %v389 = vmul.f32 %v364, %v372
  %v390 = vmul.f32 %v363, %v376
  %v391 = vmul.f32 %v362, %v380
  %v392 = vmul.f32 %v365, %v384
  %v393 = vpack.c.bf16 %v389, %v389
  %v394 = vpack.c.bf16 %v390, %v390
  %v395 = vpack.c.bf16 %v391, %v391
  %v396 = vpack.c.bf16 %v392, %v392
  %v401 = vunpack.c.l.b16 %v393
  %v402 = vunpack.c.l.b16 %v394
  %v403 = vunpack.c.l.b16 %v395
  %v404 = vunpack.c.l.b16 %v396
  %v405 = vpack.c.b16 %v402, %v401
  %v406 = vpack.c.b16 %v404, %v403
  %409 = vst [vmem:[#allocation2 + $0x30] sm:$0x33] %v405
  %410 = vst [vmem:[#allocation2 + $0x38] sm:$0x33] %v406
  %411 = vrot.lane.b32.xlu0 %v30, 112
  %v412 = vpop.permute.xlu0 %411
  %413 = vrot.lane.b32.xlu0 %v34, 112
  %v414 = vpop.permute.xlu0 %413
  %415 = vrot.lane.b32.xlu0 %v31, 112
  %v416 = vpop.permute.xlu0 %415
  %417 = vrot.lane.b32.xlu0 %v35, 112
  %v418 = vpop.permute.xlu0 %417
  %vm419 = vcmp.lt.s32.totalorder %v47, 112
  %v420 = vsel %vm419, %v416, %v418
  %v421 = vsel %vm419, %v414, %v416
  %v422 = vsel %vm419, %v412, %v414
  %v423 = vsel %vm419, %v418, %v412
  %s424 = scalar_lea.vmem %s1, 28
  %v425 = vld [vmem:[%s424] sm:$0xf]
  %v427 = vlaneseq
  %v428 = vshrl.u32 %v427, 7
  %v429 = vsub.s32 0, %v428
  %v430 = vrot.slane %v425, %v429
  %v431 = vlaneseq
  %v432 = vshrl.u32 %v431, 7
  %v433 = vsub.s32 1, %v432
  %v434 = vrot.slane %v425, %v433
  %v435 = vlaneseq
  %v436 = vshrl.u32 %v435, 7
  %v437 = vsub.s32 2, %v436
  %v438 = vrot.slane %v425, %v437
  %v439 = vlaneseq
  %v440 = vshrl.u32 %v439, 7
  %v441 = vsub.s32 3, %v440
  %v442 = vrot.slane %v425, %v441
  %v447 = vmul.f32 %v422, %v430
  %v448 = vmul.f32 %v421, %v434
  %v449 = vmul.f32 %v420, %v438
  %v450 = vmul.f32 %v423, %v442
  %v451 = vpack.c.bf16 %v447, %v447
  %v452 = vpack.c.bf16 %v448, %v448
  %v453 = vpack.c.bf16 %v449, %v449
  %v454 = vpack.c.bf16 %v450, %v450
  %v459 = vunpack.c.l.b16 %v451
  %v460 = vunpack.c.l.b16 %v452
  %v461 = vunpack.c.l.b16 %v453
  %v462 = vunpack.c.l.b16 %v454
  %v463 = vpack.c.b16 %v460, %v459
  %v464 = vpack.c.b16 %v462, %v461
  %v465 = vrot.slane %v463, 6
  %v466 = vrot.slane %v464, 6
  %469 = vst [vmem:[#allocation2 + $0x30] sm:$0xcc] %v465
  %470 = vst [vmem:[#allocation2 + $0x38] sm:$0xcc] %v466
  %471 = vrot.lane.b32.xlu0 %v30, 111
  %v472 = vpop.permute.xlu0 %471
  %473 = vrot.lane.b32.xlu0 %v34, 111
  %v474 = vpop.permute.xlu0 %473
  %475 = vrot.lane.b32.xlu0 %v31, 111
  %v476 = vpop.permute.xlu0 %475
  %477 = vrot.lane.b32.xlu0 %v35, 111
  %v478 = vpop.permute.xlu0 %477
  %vm479 = vcmp.lt.s32.totalorder %v47, 111
  %v480 = vsel %vm479, %v476, %v478
  %v481 = vsel %vm479, %v474, %v476
  %v482 = vsel %vm479, %v472, %v474
  %v483 = vsel %vm479, %v478, %v472
  %s484 = scalar_lea.vmem %s1, 32
  %v485 = vld [vmem:[%s484] sm:$0xf]
  %v487 = vlaneseq
  %v488 = vshrl.u32 %v487, 7
  %v489 = vsub.s32 0, %v488
  %v490 = vrot.slane %v485, %v489
  %v491 = vlaneseq
  %v492 = vshrl.u32 %v491, 7
  %v493 = vsub.s32 1, %v492
  %v494 = vrot.slane %v485, %v493
  %v495 = vlaneseq
  %v496 = vshrl.u32 %v495, 7
  %v497 = vsub.s32 2, %v496
  %v498 = vrot.slane %v485, %v497
  %v499 = vlaneseq
  %v500 = vshrl.u32 %v499, 7
  %v501 = vsub.s32 3, %v500
  %v502 = vrot.slane %v485, %v501
  %v507 = vmul.f32 %v482, %v490
  %v508 = vmul.f32 %v481, %v494
  %v509 = vmul.f32 %v480, %v498
  %v510 = vmul.f32 %v483, %v502
  %v511 = vpack.c.bf16 %v507, %v507
  %v512 = vpack.c.bf16 %v508, %v508
  %v513 = vpack.c.bf16 %v509, %v509
  %v514 = vpack.c.bf16 %v510, %v510
  %v519 = vunpack.c.l.b16 %v511
  %v520 = vunpack.c.l.b16 %v512
  %v521 = vunpack.c.l.b16 %v513
  %v522 = vunpack.c.l.b16 %v514
  %v523 = vpack.c.b16 %v520, %v519
  %v524 = vpack.c.b16 %v522, %v521
  %527 = vst [vmem:[#allocation2 + $0x40] sm:$0x33] %v523
  %528 = vst [vmem:[#allocation2 + $0x48] sm:$0x33] %v524
  %v529 = vld [vmem:[%s2] sm:$0x7]
  %v530 = vld [vmem:[#allocation2] sm:$0xff]
  %v531 = vld [vmem:[#allocation2 + $0x8] sm:$0xff]
  %v532 = vld [vmem:[#allocation2 + $0x10] sm:$0xff]
  %v533 = vld [vmem:[#allocation2 + $0x18] sm:$0xff]
  %v534 = vld [vmem:[#allocation2 + $0x20] sm:$0xff]
  %v535 = vld [vmem:[#allocation2 + $0x28] sm:$0xff]
  %v536 = vld [vmem:[#allocation2 + $0x30] sm:$0xff]
  %v537 = vld [vmem:[#allocation2 + $0x38] sm:$0xff]
  %v538 = vld [vmem:[#allocation2 + $0x40] sm:$0x33]
  %v539 = vld [vmem:[#allocation2 + $0x48] sm:$0x33]
  %v540 = vld [vmem:[%s3] sm:$0x3f]
  %542 = vset.pattern.permute.xlu0 0
  %543 = vperm.xlu0 %542, %v540
  %v544 = vpop.permute.xlu0 %543
  %v556 = vunpack.c.l.b16 %v530
  %v557 = vunpack.c.h.b16 %v530
  %v558 = vunpack.c.l.b16 %v531
  %v559 = vunpack.c.h.b16 %v531
  %v560 = vunpack.c.l.b16 %v532
  %v561 = vunpack.c.h.b16 %v532
  %v562 = vunpack.c.l.b16 %v533
  %v563 = vunpack.c.h.b16 %v533
  %v564 = vunpack.c.l.b16 %v534
  %v565 = vunpack.c.h.b16 %v534
  %v566 = vunpack.c.l.b16 %v535
  %v567 = vunpack.c.h.b16 %v535
  %v568 = vunpack.c.l.b16 %v536
  %v569 = vunpack.c.h.b16 %v536
  %v570 = vunpack.c.l.b16 %v537
  %v571 = vunpack.c.h.b16 %v537
  %v572 = vunpack.c.l.b16 %v538
  %v573 = vunpack.c.h.b16 %v538
  %v574 = vunpack.c.l.b16 %v539
  %v575 = vunpack.c.h.b16 %v539
  %v576 = vpack.c.b16 %v560, %v556
  %v577 = vpack.c.b16 %v561, %v557
  %v578 = vpack.c.b16 %v562, %v558
  %v579 = vpack.c.b16 %v563, %v559
  %v580 = vpack.c.b16 %v568, %v564
  %v581 = vpack.c.b16 %v569, %v565
  %v582 = vpack.c.b16 %v570, %v566
  %v583 = vpack.c.b16 %v571, %v567
  %v584 = vpack.c.b16 %v572, %v572
  %v585 = vpack.c.b16 %v573, %v573
  %v586 = vpack.c.b16 %v574, %v574
  %v587 = vpack.c.b16 %v575, %v575
  %vm596 = vcmask 293888
  %v598 = vsel %vm596, %v529, 0
  %vm600 = vcmask 1041408
  %v602 = vsel %vm600, %v584, 0
  %v605 = vsel %vm600, %v585, 0
  %v608 = vsel %vm600, %v586, 0
  %v611 = vsel %vm600, %v587, 0
  %613 = vmatprep.subr.bf16.mxu0 0
  %614 = vmatpush1.bf16.msra.mxu0 0
  %615 = vmatprep.subr.bf16.mxu0 0
  %616 = vmatpush1.bf16.msra.mxu0 0
  %617 = vmatprep.subr.bf16.mxu0 0
  %618 = vmatpush1.bf16.msra.mxu0 0
  %619 = vmatprep.subr.bf16.mxu0 0
  %620 = vmatpush1.bf16.msra.mxu0 0
  %621 = vmatprep.subr.bf16.mxu0 0
  %622 = vmatpush1.bf16.msra.mxu0 0
  %623 = vmatprep.subr.bf16.mxu0 %v605
  %624 = vmatpush1.bf16.msra.mxu0 %v602
  %625 = vmatprep.subr.bf16.mxu0 %v581
  %626 = vmatpush1.bf16.msra.mxu0 %v580
  %627 = vmatprep.subr.bf16.mxu0 %v577
  %628 = vmatpush1.bf16.msra.mxu0 %v576
  %629 = vmatprep.subr.bf16.mxu0 0
  %630 = vmatpush2.bf16.msra.mxu0 0
  %631 = vmatprep.subr.bf16.mxu0 0
  %632 = vmatpush2.bf16.msra.mxu0 0
  %633 = vmatprep.subr.bf16.mxu0 0
  %634 = vmatpush2.bf16.msra.mxu0 0
  %635 = vmatprep.subr.bf16.mxu0 0
  %636 = vmatpush2.bf16.msra.mxu0 0
  %637 = vmatprep.subr.bf16.mxu0 0
  %638 = vmatpush2.bf16.msra.mxu0 0
  %639 = vmatprep.subr.bf16.mxu0 0
  %640 = vmatpush2.bf16.msra.mxu0 0
  %641 = vmatprep.subr.bf16.mxu0 0
  %642 = vmatpush2.bf16.msra.mxu0 0
  %643 = vmatprep.subr.bf16.mxu0 0
  %644 = vmatpush2.bf16.msra.mxu0 0
  %645 = vmatprep.mubr.bf16.mxu0 0
  %646 = vmatmul.mubr.bf16.gmra.mxu0 %v598
  %v647 = vpop.f32.mrf.mxu0
  %v648 = vadd.f32 %v544, %v647
  %v649 = vpop.f32.mrf.mxu0
  %v650 = vadd.f32 %v544, %v649
  %v651 = vpop.f32.mrf.mxu0
  %v652 = vpop.f32.mrf.mxu0
  %653 = vdwg.mxu0
  %654 = vmatprep.subr.bf16.mxu0 0
  %655 = vmatpush1.bf16.msra.mxu0 0
  %656 = vmatprep.subr.bf16.mxu0 0
  %657 = vmatpush1.bf16.msra.mxu0 0
  %658 = vmatprep.subr.bf16.mxu0 0
  %659 = vmatpush1.bf16.msra.mxu0 0
  %660 = vmatprep.subr.bf16.mxu0 0
  %661 = vmatpush1.bf16.msra.mxu0 0
  %662 = vmatprep.subr.bf16.mxu0 0
  %663 = vmatpush1.bf16.msra.mxu0 0
  %664 = vmatprep.subr.bf16.mxu0 %v611
  %665 = vmatpush1.bf16.msra.mxu0 %v608
  %666 = vmatprep.subr.bf16.mxu0 %v583
  %667 = vmatpush1.bf16.msra.mxu0 %v582
  %668 = vmatprep.subr.bf16.mxu0 %v579
  %669 = vmatpush1.bf16.msra.mxu0 %v578
  %670 = vmatprep.subr.bf16.mxu0 0
  %671 = vmatpush2.bf16.msra.mxu0 0
  %672 = vmatprep.subr.bf16.mxu0 0
  %673 = vmatpush2.bf16.msra.mxu0 0
  %674 = vmatprep.subr.bf16.mxu0 0
  %675 = vmatpush2.bf16.msra.mxu0 0
  %676 = vmatprep.subr.bf16.mxu0 0
  %677 = vmatpush2.bf16.msra.mxu0 0
  %678 = vmatprep.subr.bf16.mxu0 0
  %679 = vmatpush2.bf16.msra.mxu0 0
  %680 = vmatprep.subr.bf16.mxu0 0
  %681 = vmatpush2.bf16.msra.mxu0 0
  %682 = vmatprep.subr.bf16.mxu0 0
  %683 = vmatpush2.bf16.msra.mxu0 0
  %684 = vmatprep.subr.bf16.mxu0 0
  %685 = vmatpush2.bf16.msra.mxu0 0
  %686 = vmatprep.mubr.bf16.mxu0 0
  %687 = vmatmul.mubr.bf16.gmra.mxu0 %v598
  %v688 = vpop.f32.mrf.mxu0
  %v689 = vadd.f32 %v544, %v688
  %v690 = vpop.f32.mrf.mxu0
  %v691 = vadd.f32 %v544, %v690
  %v692 = vpop.f32.mrf.mxu0
  %v693 = vpop.f32.mrf.mxu0
  %694 = vdwg.mxu0
  %v695 = vmul.f32 %v648, 0.01
  %v696 = vmul.f32 %v650, 0.01
  %v697 = vmul.f32 %v689, 0.01
  %v698 = vmul.f32 %v691, 0.01
  %v699 = vmax.f32 %v648, %v695
  %v700 = vmax.f32 %v650, %v696
  %v701 = vmax.f32 %v689, %v697
  %v702 = vmax.f32 %v691, %v698
  %703 = vrot.lane.b32.xlu0 %v699, 17
  %v704 = vpop.permute.xlu0 %703
  %705 = vrot.lane.b32.xlu0 %v700, 17
  %v706 = vpop.permute.xlu0 %705
  %707 = vrot.lane.b32.xlu0 %v701, 17
  %v708 = vpop.permute.xlu0 %707
  %709 = vrot.lane.b32.xlu0 %v702, 17
  %v710 = vpop.permute.xlu0 %709
  %v711 = vsel %vm48, %v708, %v710
  %v712 = vsel %vm48, %v706, %v708
  %v713 = vsel %vm48, %v704, %v706
  %v714 = vsel %vm48, %v710, %v704
  %v715 = vld [vmem:[%s1] sm:$0xf]
  %v717 = vlaneseq
  %v718 = vshrl.u32 %v717, 7
  %v719 = vsub.s32 0, %v718
  %v720 = vrot.slane %v715, %v719
  %v721 = vlaneseq
  %v722 = vshrl.u32 %v721, 7
  %v723 = vsub.s32 1, %v722
  %v724 = vrot.slane %v715, %v723
  %v725 = vlaneseq
  %v726 = vshrl.u32 %v725, 7
  %v727 = vsub.s32 2, %v726
  %v728 = vrot.slane %v715, %v727
  %v729 = vlaneseq
  %v730 = vshrl.u32 %v729, 7
  %v731 = vsub.s32 3, %v730
  %v732 = vrot.slane %v715, %v731
  %v737 = vmul.f32 %v714, %v720
  %v738 = vmul.f32 %v713, %v724
  %v739 = vmul.f32 %v712, %v728
  %v740 = vmul.f32 %v711, %v732
  %v741 = vpack.c.bf16 %v737, %v737
  %v742 = vpack.c.bf16 %v738, %v738
  %v743 = vpack.c.bf16 %v739, %v739
  %v744 = vpack.c.bf16 %v740, %v740
  %v749 = vunpack.c.l.b16 %v741
  %v750 = vunpack.c.l.b16 %v742
  %v751 = vunpack.c.l.b16 %v743
  %v752 = vunpack.c.l.b16 %v744
  %v753 = vpack.c.b16 %v750, %v749
  %v754 = vpack.c.b16 %v752, %v751
  %757 = vst [vmem:[#allocation2] sm:$0x77] %v753
  %758 = vst [vmem:[#allocation2 + $0x8] sm:$0x77] %v754
  %759 = vrot.lane.b32.xlu0 %v699, 16
  %v760 = vpop.permute.xlu0 %759
  %761 = vrot.lane.b32.xlu0 %v700, 16
  %v762 = vpop.permute.xlu0 %761
  %763 = vrot.lane.b32.xlu0 %v701, 16
  %v764 = vpop.permute.xlu0 %763
  %765 = vrot.lane.b32.xlu0 %v702, 16
  %v766 = vpop.permute.xlu0 %765
  %v767 = vsel %vm105, %v764, %v766
  %v768 = vsel %vm105, %v762, %v764
  %v769 = vsel %vm105, %v760, %v762
  %v770 = vsel %vm105, %v766, %v760
  %v771 = vld [vmem:[%s110] sm:$0xf]
  %v773 = vlaneseq
  %v774 = vshrl.u32 %v773, 7
  %v775 = vsub.s32 0, %v774
  %v776 = vrot.slane %v771, %v775
  %v777 = vlaneseq
  %v778 = vshrl.u32 %v777, 7
  %v779 = vsub.s32 1, %v778
  %v780 = vrot.slane %v771, %v779
  %v781 = vlaneseq
  %v782 = vshrl.u32 %v781, 7
  %v783 = vsub.s32 2, %v782
  %v784 = vrot.slane %v771, %v783
  %v785 = vlaneseq
  %v786 = vshrl.u32 %v785, 7
  %v787 = vsub.s32 3, %v786
  %v788 = vrot.slane %v771, %v787
  %v793 = vmul.f32 %v770, %v776
  %v794 = vmul.f32 %v769, %v780
  %v795 = vmul.f32 %v768, %v784
  %v796 = vmul.f32 %v767, %v788
  %v797 = vpack.c.bf16 %v793, %v793
  %v798 = vpack.c.bf16 %v794, %v794
  %v799 = vpack.c.bf16 %v795, %v795
  %v800 = vpack.c.bf16 %v796, %v796
  %v805 = vunpack.c.l.b16 %v797
  %v806 = vunpack.c.l.b16 %v798
  %v807 = vunpack.c.l.b16 %v799
  %v808 = vunpack.c.l.b16 %v800
  %v809 = vpack.c.b16 %v806, %v805
  %v810 = vpack.c.b16 %v808, %v807
  %v811 = vrot.slane %v809, 5
  %v812 = vrot.slane %v810, 5
  %v813 = vrot.slane %v811, 4
  %v814 = vrot.slane %v812, 4
  %819 = vst [vmem:[#allocation2] sm:$0x88] %v811
  %820 = vst [vmem:[#allocation2 + $0x8] sm:$0x88] %v812
  %821 = vst [vmem:[#allocation2 + $0x10] sm:$0x33] %v813
  %822 = vst [vmem:[#allocation2 + $0x18] sm:$0x33] %v814
  %823 = vrot.lane.b32.xlu0 %v699, 15
  %v824 = vpop.permute.xlu0 %823
  %825 = vrot.lane.b32.xlu0 %v700, 15
  %v826 = vpop.permute.xlu0 %825
  %827 = vrot.lane.b32.xlu0 %v701, 15
  %v828 = vpop.permute.xlu0 %827
  %829 = vrot.lane.b32.xlu0 %v702, 15
  %v830 = vpop.permute.xlu0 %829
  %v831 = vsel %vm165, %v828, %v830
  %v832 = vsel %vm165, %v826, %v828
  %v833 = vsel %vm165, %v824, %v826
  %v834 = vsel %vm165, %v830, %v824
  %v835 = vld [vmem:[%s170] sm:$0xf]
  %v837 = vlaneseq
  %v838 = vshrl.u32 %v837, 7
  %v839 = vsub.s32 0, %v838
  %v840 = vrot.slane %v835, %v839
  %v841 = vlaneseq
  %v842 = vshrl.u32 %v841, 7
  %v843 = vsub.s32 1, %v842
  %v844 = vrot.slane %v835, %v843
  %v845 = vlaneseq
  %v846 = vshrl.u32 %v845, 7
  %v847 = vsub.s32 2, %v846
  %v848 = vrot.slane %v835, %v847
  %v849 = vlaneseq
  %v850 = vshrl.u32 %v849, 7
  %v851 = vsub.s32 3, %v850
  %v852 = vrot.slane %v835, %v851
  %v857 = vmul.f32 %v834, %v840
  %v858 = vmul.f32 %v833, %v844
  %v859 = vmul.f32 %v832, %v848
  %v860 = vmul.f32 %v831, %v852
  %v861 = vpack.c.bf16 %v857, %v857
  %v862 = vpack.c.bf16 %v858, %v858
  %v863 = vpack.c.bf16 %v859, %v859
  %v864 = vpack.c.bf16 %v860, %v860
  %v869 = vunpack.c.l.b16 %v861
  %v870 = vunpack.c.l.b16 %v862
  %v871 = vunpack.c.l.b16 %v863
  %v872 = vunpack.c.l.b16 %v864
  %v873 = vpack.c.b16 %v870, %v869
  %v874 = vpack.c.b16 %v872, %v871
  %v875 = vrot.slane %v873, 6
  %v876 = vrot.slane %v874, 6
  %v877 = vrot.slane %v875, 4
  %v878 = vrot.slane %v876, 4
  %883 = vst [vmem:[#allocation2 + $0x10] sm:$0xcc] %v875
  %884 = vst [vmem:[#allocation2 + $0x18] sm:$0xcc] %v876
  %885 = vst [vmem:[#allocation2 + $0x20] sm:$0x11] %v877
  %886 = vst [vmem:[#allocation2 + $0x28] sm:$0x11] %v878
  %887 = vrot.lane.b32.xlu0 %v699, 1
  %v888 = vpop.permute.xlu0 %887
  %889 = vrot.lane.b32.xlu0 %v700, 1
  %v890 = vpop.permute.xlu0 %889
  %891 = vrot.lane.b32.xlu0 %v701, 1
  %v892 = vpop.permute.xlu0 %891
  %893 = vrot.lane.b32.xlu0 %v702, 1
  %v894 = vpop.permute.xlu0 %893
  %v895 = vsel %vm223, %v892, %v894
  %v896 = vsel %vm223, %v890, %v892
  %v897 = vsel %vm223, %v888, %v890
  %v898 = vsel %vm223, %v894, %v888
  %v899 = vld [vmem:[%s228] sm:$0xf]
  %v901 = vlaneseq
  %v902 = vshrl.u32 %v901, 7
  %v903 = vsub.s32 0, %v902
  %v904 = vrot.slane %v899, %v903
  %v905 = vlaneseq
  %v906 = vshrl.u32 %v905, 7
  %v907 = vsub.s32 1, %v906
  %v908 = vrot.slane %v899, %v907
  %v909 = vlaneseq
  %v910 = vshrl.u32 %v909, 7
  %v911 = vsub.s32 2, %v910
  %v912 = vrot.slane %v899, %v911
  %v913 = vlaneseq
  %v914 = vshrl.u32 %v913, 7
  %v915 = vsub.s32 3, %v914
  %v916 = vrot.slane %v899, %v915
  %v921 = vmul.f32 %v898, %v904
  %v922 = vmul.f32 %v897, %v908
  %v923 = vmul.f32 %v896, %v912
  %v924 = vmul.f32 %v895, %v916
  %v925 = vpack.c.bf16 %v921, %v921
  %v926 = vpack.c.bf16 %v922, %v922
  %v927 = vpack.c.bf16 %v923, %v923
  %v928 = vpack.c.bf16 %v924, %v924
  %v933 = vunpack.c.l.b16 %v925
  %v934 = vunpack.c.l.b16 %v926
  %v935 = vunpack.c.l.b16 %v927
  %v936 = vunpack.c.l.b16 %v928
  %v937 = vpack.c.b16 %v934, %v933
  %v938 = vpack.c.b16 %v936, %v935
  %v939 = vrot.slane %v937, 7
  %v940 = vrot.slane %v938, 7
  %943 = vst [vmem:[#allocation2 + $0x20] sm:$0xee] %v939
  %944 = vst [vmem:[#allocation2 + $0x28] sm:$0xee] %v940
  %v945 = vpack.c.bf16 %v699, %v699
  %v946 = vpack.c.bf16 %v700, %v700
  %v947 = vpack.c.bf16 %v701, %v701
  %v948 = vpack.c.bf16 %v702, %v702
  %v953 = vunpack.c.l.b16 %v945
  %v954 = vunpack.c.l.b16 %v946
  %v955 = vunpack.c.l.b16 %v947
  %v956 = vunpack.c.l.b16 %v948
  %v957 = vpack.c.b16 %v954, %v953
  %v958 = vpack.c.b16 %v956, %v955
  %961 = vst [vmem:[#allocation2 + $0x30] sm:$0x77] %v957
  %962 = vst [vmem:[#allocation2 + $0x38] sm:$0x77] %v958
  %963 = vrot.lane.b32.xlu0 %v699, 127
  %v964 = vpop.permute.xlu0 %963
  %965 = vrot.lane.b32.xlu0 %v700, 127
  %v966 = vpop.permute.xlu0 %965
  %967 = vrot.lane.b32.xlu0 %v701, 127
  %v968 = vpop.permute.xlu0 %967
  %969 = vrot.lane.b32.xlu0 %v702, 127
  %v970 = vpop.permute.xlu0 %969
  %v971 = vsel %vm301, %v968, %v970
  %v972 = vsel %vm301, %v966, %v968
  %v973 = vsel %vm301, %v964, %v966
  %v974 = vsel %vm301, %v970, %v964
  %v975 = vld [vmem:[%s306] sm:$0xf]
  %v977 = vlaneseq
  %v978 = vshrl.u32 %v977, 7
  %v979 = vsub.s32 0, %v978
  %v980 = vrot.slane %v975, %v979
  %v981 = vlaneseq
  %v982 = vshrl.u32 %v981, 7
  %v983 = vsub.s32 1, %v982
  %v984 = vrot.slane %v975, %v983
  %v985 = vlaneseq
  %v986 = vshrl.u32 %v985, 7
  %v987 = vsub.s32 2, %v986
  %v988 = vrot.slane %v975, %v987
  %v989 = vlaneseq
  %v990 = vshrl.u32 %v989, 7
  %v991 = vsub.s32 3, %v990
  %v992 = vrot.slane %v975, %v991
  %v997 = vmul.f32 %v973, %v980
  %v998 = vmul.f32 %v972, %v984
  %v999 = vmul.f32 %v971, %v988
  %v1000 = vmul.f32 %v974, %v992
  %v1001 = vpack.c.bf16 %v997, %v997
  %v1002 = vpack.c.bf16 %v998, %v998
  %v1003 = vpack.c.bf16 %v999, %v999
  %v1004 = vpack.c.bf16 %v1000, %v1000
  %v1009 = vunpack.c.l.b16 %v1001
  %v1010 = vunpack.c.l.b16 %v1002
  %v1011 = vunpack.c.l.b16 %v1003
  %v1012 = vunpack.c.l.b16 %v1004
  %v1013 = vpack.c.b16 %v1010, %v1009
  %v1014 = vpack.c.b16 %v1012, %v1011
  %v1015 = vrot.slane %v1013, 5
  %v1016 = vrot.slane %v1014, 5
  %v1017 = vrot.slane %v1015, 4
  %v1018 = vrot.slane %v1016, 4
  %1023 = vst [vmem:[#allocation2 + $0x30] sm:$0x88] %v1015
  %1024 = vst [vmem:[#allocation2 + $0x38] sm:$0x88] %v1016
  %1025 = vst [vmem:[#allocation2 + $0x40] sm:$0x33] %v1017
  %1026 = vst [vmem:[#allocation2 + $0x48] sm:$0x33] %v1018
  %1027 = vrot.lane.b32.xlu0 %v699, 113
  %v1028 = vpop.permute.xlu0 %1027
  %1029 = vrot.lane.b32.xlu0 %v700, 113
  %v1030 = vpop.permute.xlu0 %1029
  %1031 = vrot.lane.b32.xlu0 %v701, 113
  %v1032 = vpop.permute.xlu0 %1031
  %1033 = vrot.lane.b32.xlu0 %v702, 113
  %v1034 = vpop.permute.xlu0 %1033
  %v1035 = vsel %vm361, %v1032, %v1034
  %v1036 = vsel %vm361, %v1030, %v1032
  %v1037 = vsel %vm361, %v1028, %v1030
  %v1038 = vsel %vm361, %v1034, %v1028
  %v1039 = vld [vmem:[%s366] sm:$0xf]
  %v1041 = vlaneseq
  %v1042 = vshrl.u32 %v1041, 7
  %v1043 = vsub.s32 0, %v1042
  %v1044 = vrot.slane %v1039, %v1043
  %v1045 = vlaneseq
  %v1046 = vshrl.u32 %v1045, 7
  %v1047 = vsub.s32 1, %v1046
  %v1048 = vrot.slane %v1039, %v1047
  %v1049 = vlaneseq
  %v1050 = vshrl.u32 %v1049, 7
  %v1051 = vsub.s32 2, %v1050
  %v1052 = vrot.slane %v1039, %v1051
  %v1053 = vlaneseq
  %v1054 = vshrl.u32 %v1053, 7
  %v1055 = vsub.s32 3, %v1054
  %v1056 = vrot.slane %v1039, %v1055
  %v1061 = vmul.f32 %v1037, %v1044
  %v1062 = vmul.f32 %v1036, %v1048
  %v1063 = vmul.f32 %v1035, %v1052
  %v1064 = vmul.f32 %v1038, %v1056
  %v1065 = vpack.c.bf16 %v1061, %v1061
  %v1066 = vpack.c.bf16 %v1062, %v1062
  %v1067 = vpack.c.bf16 %v1063, %v1063
  %v1068 = vpack.c.bf16 %v1064, %v1064
  %v1073 = vunpack.c.l.b16 %v1065
  %v1074 = vunpack.c.l.b16 %v1066
  %v1075 = vunpack.c.l.b16 %v1067
  %v1076 = vunpack.c.l.b16 %v1068
  %v1077 = vpack.c.b16 %v1074, %v1073
  %v1078 = vpack.c.b16 %v1076, %v1075
  %v1079 = vrot.slane %v1077, 6
  %v1080 = vrot.slane %v1078, 6
  %v1081 = vrot.slane %v1079, 4
  %v1082 = vrot.slane %v1080, 4
  %1087 = vst [vmem:[#allocation2 + $0x40] sm:$0xcc] %v1079
  %1088 = vst [vmem:[#allocation2 + $0x48] sm:$0xcc] %v1080
  %1089 = vst [vmem:[#allocation2 + $0x50] sm:$0x11] %v1081
  %1090 = vst [vmem:[#allocation2 + $0x58] sm:$0x11] %v1082
  %1091 = vrot.lane.b32.xlu0 %v699, 112
  %v1092 = vpop.permute.xlu0 %1091
  %1093 = vrot.lane.b32.xlu0 %v700, 112
  %v1094 = vpop.permute.xlu0 %1093
  %1095 = vrot.lane.b32.xlu0 %v701, 112
  %v1096 = vpop.permute.xlu0 %1095
  %1097 = vrot.lane.b32.xlu0 %v702, 112
  %v1098 = vpop.permute.xlu0 %1097
  %v1099 = vsel %vm419, %v1096, %v1098
  %v1100 = vsel %vm419, %v1094, %v1096
  %v1101 = vsel %vm419, %v1092, %v1094
  %v1102 = vsel %vm419, %v1098, %v1092
  %v1103 = vld [vmem:[%s424] sm:$0xf]
  %v1105 = vlaneseq
  %v1106 = vshrl.u32 %v1105, 7
  %v1107 = vsub.s32 0, %v1106
  %v1108 = vrot.slane %v1103, %v1107
  %v1109 = vlaneseq
  %v1110 = vshrl.u32 %v1109, 7
  %v1111 = vsub.s32 1, %v1110
  %v1112 = vrot.slane %v1103, %v1111
  %v1113 = vlaneseq
  %v1114 = vshrl.u32 %v1113, 7
  %v1115 = vsub.s32 2, %v1114
  %v1116 = vrot.slane %v1103, %v1115
  %v1117 = vlaneseq
  %v1118 = vshrl.u32 %v1117, 7
  %v1119 = vsub.s32 3, %v1118
  %v1120 = vrot.slane %v1103, %v1119
  %v1125 = vmul.f32 %v1101, %v1108
  %v1126 = vmul.f32 %v1100, %v1112
  %v1127 = vmul.f32 %v1099, %v1116
  %v1128 = vmul.f32 %v1102, %v1120
  %v1129 = vpack.c.bf16 %v1125, %v1125
  %v1130 = vpack.c.bf16 %v1126, %v1126
  %v1131 = vpack.c.bf16 %v1127, %v1127
  %v1132 = vpack.c.bf16 %v1128, %v1128
  %v1137 = vunpack.c.l.b16 %v1129
  %v1138 = vunpack.c.l.b16 %v1130
  %v1139 = vunpack.c.l.b16 %v1131
  %v1140 = vunpack.c.l.b16 %v1132
  %v1141 = vpack.c.b16 %v1138, %v1137
  %v1142 = vpack.c.b16 %v1140, %v1139
  %v1143 = vrot.slane %v1141, 7
  %v1144 = vrot.slane %v1142, 7
  %1147 = vst [vmem:[#allocation2 + $0x50] sm:$0xee] %v1143
  %1148 = vst [vmem:[#allocation2 + $0x58] sm:$0xee] %v1144
  %1149 = vrot.lane.b32.xlu0 %v699, 111
  %v1150 = vpop.permute.xlu0 %1149
  %1151 = vrot.lane.b32.xlu0 %v700, 111
  %v1152 = vpop.permute.xlu0 %1151
  %1153 = vrot.lane.b32.xlu0 %v701, 111
  %v1154 = vpop.permute.xlu0 %1153
  %1155 = vrot.lane.b32.xlu0 %v702, 111
  %v1156 = vpop.permute.xlu0 %1155
  %v1157 = vsel %vm479, %v1154, %v1156
  %v1158 = vsel %vm479, %v1152, %v1154
  %v1159 = vsel %vm479, %v1150, %v1152
  %v1160 = vsel %vm479, %v1156, %v1150
  %v1161 = vld [vmem:[%s484] sm:$0xf]
  %v1163 = vlaneseq
  %v1164 = vshrl.u32 %v1163, 7
  %v1165 = vsub.s32 0, %v1164
  %v1166 = vrot.slane %v1161, %v1165
  %v1167 = vlaneseq
  %v1168 = vshrl.u32 %v1167, 7
  %v1169 = vsub.s32 1, %v1168
  %v1170 = vrot.slane %v1161, %v1169
  %v1171 = vlaneseq
  %v1172 = vshrl.u32 %v1171, 7
  %v1173 = vsub.s32 2, %v1172
  %v1174 = vrot.slane %v1161, %v1173
  %v1175 = vlaneseq
  %v1176 = vshrl.u32 %v1175, 7
  %v1177 = vsub.s32 3, %v1176
  %v1178 = vrot.slane %v1161, %v1177
  %v1183 = vmul.f32 %v1159, %v1166
  %v1184 = vmul.f32 %v1158, %v1170
  %v1185 = vmul.f32 %v1157, %v1174
  %v1186 = vmul.f32 %v1160, %v1178
  %v1187 = vpack.c.bf16 %v1183, %v1183
  %v1188 = vpack.c.bf16 %v1184, %v1184
  %v1189 = vpack.c.bf16 %v1185, %v1185
  %v1190 = vpack.c.bf16 %v1186, %v1186
  %v1195 = vunpack.c.l.b16 %v1187
  %v1196 = vunpack.c.l.b16 %v1188
  %v1197 = vunpack.c.l.b16 %v1189
  %v1198 = vunpack.c.l.b16 %v1190
  %v1199 = vpack.c.b16 %v1196, %v1195
  %v1200 = vpack.c.b16 %v1198, %v1197
  %1203 = vst [vmem:[#allocation2 + $0x60] sm:$0x77] %v1199
  %1204 = vst [vmem:[#allocation2 + $0x68] sm:$0x77] %v1200
  %v1205 = vld [vmem:[%s4] sm:$0x7]
  %v1206 = vld [vmem:[#allocation2] sm:$0xff]
  %v1207 = vld [vmem:[#allocation2 + $0x8] sm:$0xff]
  %v1208 = vld [vmem:[#allocation2 + $0x10] sm:$0xff]
  %v1209 = vld [vmem:[#allocation2 + $0x18] sm:$0xff]
  %v1210 = vld [vmem:[#allocation2 + $0x20] sm:$0xff]
  %v1211 = vld [vmem:[#allocation2 + $0x28] sm:$0xff]
  %v1212 = vld [vmem:[#allocation2 + $0x30] sm:$0xff]
  %v1213 = vld [vmem:[#allocation2 + $0x38] sm:$0xff]
  %v1214 = vld [vmem:[#allocation2 + $0x40] sm:$0xff]
  %v1215 = vld [vmem:[#allocation2 + $0x48] sm:$0xff]
  %v1216 = vld [vmem:[#allocation2 + $0x50] sm:$0xff]
  %v1217 = vld [vmem:[#allocation2 + $0x58] sm:$0xff]
  %v1218 = vld [vmem:[#allocation2 + $0x60] sm:$0x77]
  %v1219 = vld [vmem:[#allocation2 + $0x68] sm:$0x77]
  %v1220 = vld [vmem:[%s5] sm:$0x3f]
  %1222 = vset.pattern.permute.xlu0 0
  %1223 = vperm.xlu0 %1222, %v1220
  %v1224 = vpop.permute.xlu0 %1223
  %v1240 = vunpack.c.l.b16 %v1206
  %v1241 = vunpack.c.h.b16 %v1206
  %v1242 = vunpack.c.l.b16 %v1207
  %v1243 = vunpack.c.h.b16 %v1207
  %v1244 = vunpack.c.l.b16 %v1208
  %v1245 = vunpack.c.h.b16 %v1208
  %v1246 = vunpack.c.l.b16 %v1209
  %v1247 = vunpack.c.h.b16 %v1209
  %v1248 = vunpack.c.l.b16 %v1210
  %v1249 = vunpack.c.h.b16 %v1210
  %v1250 = vunpack.c.l.b16 %v1211
  %v1251 = vunpack.c.h.b16 %v1211
  %v1252 = vunpack.c.l.b16 %v1212
  %v1253 = vunpack.c.h.b16 %v1212
  %v1254 = vunpack.c.l.b16 %v1213
  %v1255 = vunpack.c.h.b16 %v1213
  %v1256 = vunpack.c.l.b16 %v1214
  %v1257 = vunpack.c.h.b16 %v1214
  %v1258 = vunpack.c.l.b16 %v1215
  %v1259 = vunpack.c.h.b16 %v1215
  %v1260 = vunpack.c.l.b16 %v1216
  %v1261 = vunpack.c.h.b16 %v1216
  %v1262 = vunpack.c.l.b16 %v1217
  %v1263 = vunpack.c.h.b16 %v1217
  %v1264 = vunpack.c.l.b16 %v1218
  %v1265 = vunpack.c.h.b16 %v1218
  %v1266 = vunpack.c.l.b16 %v1219
  %v1267 = vunpack.c.h.b16 %v1219
  %v1268 = vpack.c.b16 %v1244, %v1240
  %v1269 = vpack.c.b16 %v1245, %v1241
  %v1270 = vpack.c.b16 %v1246, %v1242
  %v1271 = vpack.c.b16 %v1247, %v1243
  %v1272 = vpack.c.b16 %v1252, %v1248
  %v1273 = vpack.c.b16 %v1253, %v1249
  %v1274 = vpack.c.b16 %v1254, %v1250
  %v1275 = vpack.c.b16 %v1255, %v1251
  %v1276 = vpack.c.b16 %v1260, %v1256
  %v1277 = vpack.c.b16 %v1261, %v1257
  %v1278 = vpack.c.b16 %v1262, %v1258
  %v1279 = vpack.c.b16 %v1263, %v1259
  %v1280 = vpack.c.b16 %v1264, %v1264
  %v1281 = vpack.c.b16 %v1265, %v1265
  %v1282 = vpack.c.b16 %v1266, %v1266
  %v1283 = vpack.c.b16 %v1267, %v1267
  %vm1296 = vcmask 441344
  %v1298 = vsel %vm1296, %v1205, 0
  %vm1300 = vcmask 1042432
  %v1302 = vsel %vm1300, %v1280, 0
  %v1305 = vsel %vm1300, %v1281, 0
  %v1308 = vsel %vm1300, %v1282, 0
  %v1311 = vsel %vm1300, %v1283, 0
  %1313 = vmatprep.subr.bf16.mxu0 0
  %1314 = vmatpush1.bf16.msra.mxu0 0
  %1315 = vmatprep.subr.bf16.mxu0 0
  %1316 = vmatpush1.bf16.msra.mxu0 0
  %1317 = vmatprep.subr.bf16.mxu0 0
  %1318 = vmatpush1.bf16.msra.mxu0 0
  %1319 = vmatprep.subr.bf16.mxu0 0
  %1320 = vmatpush1.bf16.msra.mxu0 0
  %1321 = vmatprep.subr.bf16.mxu0 %v1305
  %1322 = vmatpush1.bf16.msra.mxu0 %v1302
  %1323 = vmatprep.subr.bf16.mxu0 %v1277
  %1324 = vmatpush1.bf16.msra.mxu0 %v1276
  %1325 = vmatprep.subr.bf16.mxu0 %v1273
  %1326 = vmatpush1.bf16.msra.mxu0 %v1272
  %1327 = vmatprep.subr.bf16.mxu0 %v1269
  %1328 = vmatpush1.bf16.msra.mxu0 %v1268
  %1329 = vmatprep.subr.bf16.mxu0 0
  %1330 = vmatpush2.bf16.msra.mxu0 0
  %1331 = vmatprep.subr.bf16.mxu0 0
  %1332 = vmatpush2.bf16.msra.mxu0 0
  %1333 = vmatprep.subr.bf16.mxu0 0
  %1334 = vmatpush2.bf16.msra.mxu0 0
  %1335 = vmatprep.subr.bf16.mxu0 0
  %1336 = vmatpush2.bf16.msra.mxu0 0
  %1337 = vmatprep.subr.bf16.mxu0 0
  %1338 = vmatpush2.bf16.msra.mxu0 0
  %1339 = vmatprep.subr.bf16.mxu0 0
  %1340 = vmatpush2.bf16.msra.mxu0 0
  %1341 = vmatprep.subr.bf16.mxu0 0
  %1342 = vmatpush2.bf16.msra.mxu0 0
  %1343 = vmatprep.subr.bf16.mxu0 0
  %1344 = vmatpush2.bf16.msra.mxu0 0
  %1345 = vmatprep.mubr.bf16.mxu0 0
  %1346 = vmatmul.mubr.bf16.gmra.mxu0 %v1298
  %v1347 = vpop.f32.mrf.mxu0
  %v1348 = vadd.f32 %v1224, %v1347
  %v1349 = vpop.f32.mrf.mxu0
  %v1350 = vadd.f32 %v1224, %v1349
  %v1351 = vpop.f32.mrf.mxu0
  %v1352 = vpop.f32.mrf.mxu0
  %1353 = vdwg.mxu0
  %1354 = vmatprep.subr.bf16.mxu0 0
  %1355 = vmatpush1.bf16.msra.mxu0 0
  %1356 = vmatprep.subr.bf16.mxu0 0
  %1357 = vmatpush1.bf16.msra.mxu0 0
  %1358 = vmatprep.subr.bf16.mxu0 0
  %1359 = vmatpush1.bf16.msra.mxu0 0
  %1360 = vmatprep.subr.bf16.mxu0 0
  %1361 = vmatpush1.bf16.msra.mxu0 0
  %1362 = vmatprep.subr.bf16.mxu0 %v1311
  %1363 = vmatpush1.bf16.msra.mxu0 %v1308
  %1364 = vmatprep.subr.bf16.mxu0 %v1279
  %1365 = vmatpush1.bf16.msra.mxu0 %v1278
  %1366 = vmatprep.subr.bf16.mxu0 %v1275
  %1367 = vmatpush1.bf16.msra.mxu0 %v1274
  %1368 = vmatprep.subr.bf16.mxu0 %v1271
  %1369 = vmatpush1.bf16.msra.mxu0 %v1270
  %1370 = vmatprep.subr.bf16.mxu0 0
  %1371 = vmatpush2.bf16.msra.mxu0 0
  %1372 = vmatprep.subr.bf16.mxu0 0
  %1373 = vmatpush2.bf16.msra.mxu0 0
  %1374 = vmatprep.subr.bf16.mxu0 0
  %1375 = vmatpush2.bf16.msra.mxu0 0
  %1376 = vmatprep.subr.bf16.mxu0 0
  %1377 = vmatpush2.bf16.msra.mxu0 0
  %1378 = vmatprep.subr.bf16.mxu0 0
  %1379 = vmatpush2.bf16.msra.mxu0 0
  %1380 = vmatprep.subr.bf16.mxu0 0
  %1381 = vmatpush2.bf16.msra.mxu0 0
  %1382 = vmatprep.subr.bf16.mxu0 0
  %1383 = vmatpush2.bf16.msra.mxu0 0
  %1384 = vmatprep.subr.bf16.mxu0 0
  %1385 = vmatpush2.bf16.msra.mxu0 0
  %1386 = vmatprep.mubr.bf16.mxu0 0
  %1387 = vmatmul.mubr.bf16.gmra.mxu0 %v1298
  %v1388 = vpop.f32.mrf.mxu0
  %v1389 = vadd.f32 %v1224, %v1388
  %v1390 = vpop.f32.mrf.mxu0
  %v1391 = vadd.f32 %v1224, %v1390
  %v1392 = vpop.f32.mrf.mxu0
  %v1393 = vpop.f32.mrf.mxu0
  %1394 = vdwg.mxu0
  %v1395 = vmul.f32 %v1348, 0.01
  %v1396 = vmul.f32 %v1350, 0.01
  %v1397 = vmul.f32 %v1389, 0.01
  %v1398 = vmul.f32 %v1391, 0.01
  %v1399 = vmax.f32 %v1348, %v1395
  %v1400 = vmax.f32 %v1350, %v1396
  %v1401 = vmax.f32 %v1389, %v1397
  %v1402 = vmax.f32 %v1391, %v1398
  %v1403 = vld [vmem:[%s6] sm:$0x7]
  %v1404 = vld [vmem:[%s7] sm:$0x3f]
  %1406 = vset.pattern.permute.xlu0 0
  %1407 = vperm.xlu0 %1406, %v1404
  %v1408 = vpop.permute.xlu0 %1407
  %vm1410 = vcmask 31744
  %v1412 = vsel %vm1410, %v1403, 0
  %v1415 = vsel %vm600, %v275, 0
  %v1418 = vsel %vm600, %v276, 0
  %v1421 = vsel %vm600, %v277, 0
  %v1424 = vsel %vm600, %v278, 0
  %1426 = vmatprep.subr.bf16.mxu0 0
  %1427 = vmatpush1.bf16.msra.mxu0 0
  %1428 = vmatprep.subr.bf16.mxu0 0
  %1429 = vmatpush1.bf16.msra.mxu0 0
  %1430 = vmatprep.subr.bf16.mxu0 0
  %1431 = vmatpush1.bf16.msra.mxu0 0
  %1432 = vmatprep.subr.bf16.mxu0 0
  %1433 = vmatpush1.bf16.msra.mxu0 0
  %1434 = vmatprep.subr.bf16.mxu0 0
  %1435 = vmatpush1.bf16.msra.mxu0 0
  %1436 = vmatprep.subr.bf16.mxu0 0
  %1437 = vmatpush1.bf16.msra.mxu0 0
  %1438 = vmatprep.subr.bf16.mxu0 0
  %1439 = vmatpush1.bf16.msra.mxu0 0
  %1440 = vmatprep.subr.bf16.mxu0 %v1418
  %1441 = vmatpush1.bf16.msra.mxu0 %v1415
  %1442 = vmatprep.subr.bf16.mxu0 0
  %1443 = vmatpush2.bf16.msra.mxu0 0
  %1444 = vmatprep.subr.bf16.mxu0 0
  %1445 = vmatpush2.bf16.msra.mxu0 0
  %1446 = vmatprep.subr.bf16.mxu0 0
  %1447 = vmatpush2.bf16.msra.mxu0 0
  %1448 = vmatprep.subr.bf16.mxu0 0
  %1449 = vmatpush2.bf16.msra.mxu0 0
  %1450 = vmatprep.subr.bf16.mxu0 0
  %1451 = vmatpush2.bf16.msra.mxu0 0
  %1452 = vmatprep.subr.bf16.mxu0 0
  %1453 = vmatpush2.bf16.msra.mxu0 0
  %1454 = vmatprep.subr.bf16.mxu0 0
  %1455 = vmatpush2.bf16.msra.mxu0 0
  %1456 = vmatprep.subr.bf16.mxu0 0
  %1457 = vmatpush2.bf16.msra.mxu0 0
  %1458 = vmatprep.mubr.bf16.mxu0 0
  %1459 = vmatmul.mubr.bf16.gmra.mxu0 %v1412
  %v1460 = vpop.f32.mrf.mxu0
  %v1461 = vadd.f32 %v1408, %v1460
  %v1462 = vpop.f32.mrf.mxu0
  %v1463 = vadd.f32 %v1408, %v1462
  %v1464 = vpop.f32.mrf.mxu0
  %v1465 = vpop.f32.mrf.mxu0
  %1466 = vdwg.mxu0
  %1467 = vmatprep.subr.bf16.mxu0 0
  %1468 = vmatpush1.bf16.msra.mxu0 0
  %1469 = vmatprep.subr.bf16.mxu0 0
  %1470 = vmatpush1.bf16.msra.mxu0 0
  %1471 = vmatprep.subr.bf16.mxu0 0
  %1472 = vmatpush1.bf16.msra.mxu0 0
  %1473 = vmatprep.subr.bf16.mxu0 0
  %1474 = vmatpush1.bf16.msra.mxu0 0
  %1475 = vmatprep.subr.bf16.mxu0 0
  %1476 = vmatpush1.bf16.msra.mxu0 0
  %1477 = vmatprep.subr.bf16.mxu0 0
  %1478 = vmatpush1.bf16.msra.mxu0 0
  %1479 = vmatprep.subr.bf16.mxu0 0
  %1480 = vmatpush1.bf16.msra.mxu0 0
  %1481 = vmatprep.subr.bf16.mxu0 %v1424
  %1482 = vmatpush1.bf16.msra.mxu0 %v1421
  %1483 = vmatprep.subr.bf16.mxu0 0
  %1484 = vmatpush2.bf16.msra.mxu0 0
  %1485 = vmatprep.subr.bf16.mxu0 0
  %1486 = vmatpush2.bf16.msra.mxu0 0
  %1487 = vmatprep.subr.bf16.mxu0 0
  %1488 = vmatpush2.bf16.msra.mxu0 0
  %1489 = vmatprep.subr.bf16.mxu0 0
  %1490 = vmatpush2.bf16.msra.mxu0 0
  %1491 = vmatprep.subr.bf16.mxu0 0
  %1492 = vmatpush2.bf16.msra.mxu0 0
  %1493 = vmatprep.subr.bf16.mxu0 0
  %1494 = vmatpush2.bf16.msra.mxu0 0
  %1495 = vmatprep.subr.bf16.mxu0 0
  %1496 = vmatpush2.bf16.msra.mxu0 0
  %1497 = vmatprep.subr.bf16.mxu0 0
  %1498 = vmatpush2.bf16.msra.mxu0 0
  %1499 = vmatprep.mubr.bf16.mxu0 0
  %1500 = vmatmul.mubr.bf16.gmra.mxu0 %v1412
  %v1501 = vpop.f32.mrf.mxu0
  %v1502 = vadd.f32 %v1408, %v1501
  %v1503 = vpop.f32.mrf.mxu0
  %v1504 = vadd.f32 %v1408, %v1503
  %v1505 = vpop.f32.mrf.mxu0
  %v1506 = vpop.f32.mrf.mxu0
  %1507 = vdwg.mxu0
  %v1508 = vadd.f32 %v1399, %v1461
  %v1509 = vadd.f32 %v1400, %v1463
  %v1510 = vadd.f32 %v1401, %v1502
  %v1511 = vadd.f32 %v1402, %v1504
  %1512 = vst [vmem:[%s8] sm:$0x3f] %v1508
  %1513 = vst [vmem:[%s8 + $0x8] sm:$0x3f] %v1509
  %1514 = vst [vmem:[%s8 + $0x10] sm:$0x3f] %v1510
  %1515 = vst [vmem:[%s8 + $0x18] sm:$0x3f] %v1511
  // Predicated region
  $region34: #{_lambda_.1} parent=0 // pred_check
    _
  $region35: #{_lambda_.1} parent=0 // pred_check_branch
    %1517 = sbr.rel (0) target = $region37
  $region36: #{_lambda_.1} parent=0 // pred_region
    _
  $region37: #{_lambda_.1} parent=0 // pred_fallthru
    _
  // Predicated region
  $region38: #{_lambda_.1} parent=0 // pred_check
    _
  $region39: #{_lambda_.1} parent=0 // pred_check_branch
    %1519 = sbr.rel (0) target = $region41
  $region40: #{_lambda_.1} parent=0 // pred_region
    _
  $region41: #{_lambda_.1} parent=0 // pred_fallthru
    _

</llo_original>
